<compile_context>
chip_gen: v7x
topology: tpu7x:2x2x1
jax: 0.10.0
libtpu: 0.0.40
codegen_flags: <defaults>
</compile_context>

<pallas_src>
import functools

import numpy as np

import jax
import jax.numpy as jnp
from jax.experimental import pallas as pl
from jax.experimental.pallas import tpu as pltpu


def _down_kernel(x_ref, m1_ref, s1_ref, b1_ref, m2_ref, s2_ref, b2_ref,
                 pe_ref, po_ref, conv_ref, pool_ref, xpad, ypad):
    # x_ref:    (1, H, W*Cin)          lane-packed input rows (one batch element)
    # m1_ref:   (3, W*Cin,  W*Cout)    banded conv1 weights (one per vertical tap)
    # m2_ref:   (3, W*Cout, W*Cout)    banded conv2 weights
    # s*/b*_ref:(1, W*Cout)            folded BN scale / bias (tiled over w)
    # pe/po:    (W*Cout, (W//2)*Cout)  0/1 selection matrices (even / odd columns)
    # conv_ref: (1, H, W*Cout)         conv_block output (packed)
    # pool_ref: (1, H//2, (W//2)*Cout) 2x2 max-pooled output (packed)
    # xpad/ypad:(H+2, W*Cin/Cout)      VMEM scratch with 1-row zero halo
    H = x_ref.shape[1]
    WCi = x_ref.shape[2]
    WCo = conv_ref.shape[2]

    # ---------- conv1 (3x3, pad=1) + folded BN + ReLU ----------
    # vertical halo rows zeroed (horizontal pad is folded into m1/m2 bands)
    xpad[0:1, :] = jnp.zeros((1, WCi), jnp.float32)
    xpad[H + 1:H + 2, :] = jnp.zeros((1, WCi), jnp.float32)
    xpad[1:H + 1, :] = x_ref[0]

    acc = jnp.dot(xpad[0:H, :], m1_ref[0], preferred_element_type=jnp.float32)
    acc += jnp.dot(xpad[1:H + 1, :], m1_ref[1], preferred_element_type=jnp.float32)
    acc += jnp.dot(xpad[2:H + 2, :], m1_ref[2], preferred_element_type=jnp.float32)
    y1 = jnp.maximum(acc * s1_ref[...] + b1_ref[...], 0.0)       # (H, W*Cout)

    # ---------- conv2 (3x3, pad=1) + folded BN + ReLU ----------
    ypad[0:1, :] = jnp.zeros((1, WCo), jnp.float32)
    ypad[H + 1:H + 2, :] = jnp.zeros((1, WCo), jnp.float32)
    ypad[1:H + 1, :] = y1

    acc2 = jnp.dot(ypad[0:H, :], m2_ref[0], preferred_element_type=jnp.float32)
    acc2 += jnp.dot(ypad[1:H + 1, :], m2_ref[1], preferred_element_type=jnp.float32)
    acc2 += jnp.dot(ypad[2:H + 2, :], m2_ref[2], preferred_element_type=jnp.float32)
    y2 = jnp.maximum(acc2 * s2_ref[...] + b2_ref[...], 0.0)      # (H, W*Cout)

    conv_ref[0] = y2.astype(conv_ref.dtype)                      # 128-lane dense store

    # ---------- 2x2 max pool, stride 2 ----------
    yr = y2.reshape(H // 2, 2, WCo)
    a = jnp.maximum(yr[:, 0], yr[:, 1])                          # rows pooled
    pooled = jnp.maximum(                                        # columns pooled (exact 0/1 gathers)
        jnp.dot(a, pe_ref[...], preferred_element_type=jnp.float32),
        jnp.dot(a, po_ref[...], preferred_element_type=jnp.float32))
    pool_ref[0] = pooled.astype(pool_ref.dtype)


def _band_matrices(w_hwio, W):
    """Fold the 3 horizontal taps + horizontal zero-pad of a 3x3 conv into
    banded matrices: m[dh][(w+dw-1)*cin+ci, w*cout+co] = w[dh, dw, ci, co]."""
    w_np = np.asarray(w_hwio, dtype=np.float32)
    kh, kw, cin, cout = w_np.shape
    m = np.zeros((kh, W * cin, W * cout), np.float32)
    for dh in range(kh):
        for dw in range(kw):
            for col in range(W):
                src = col + dw - 1
                if 0 <= src < W:
                    m[dh, src * cin:(src + 1) * cin,
                      col * cout:(col + 1) * cout] = w_np[dh, dw]
    return jnp.asarray(m)


def _pool_selectors(W, cout):
    """0/1 matrices picking the even / odd w-blocks of a packed (w, c) row."""
    se = np.zeros((W * cout, (W // 2) * cout), np.float32)
    so = np.zeros_like(se)
    eye = np.eye(cout, dtype=np.float32)
    for j in range(W // 2):
        se[(2 * j) * cout:(2 * j + 1) * cout, j * cout:(j + 1) * cout] = eye
        so[(2 * j + 1) * cout:(2 * j + 2) * cout, j * cout:(j + 1) * cout] = eye
    return jnp.asarray(se), jnp.asarray(so)


def down_forward(x_nchw, params):
    """Reproduces `down.forward`: returns (encoder_output, conv_block_out), NCHW."""
    w1, scale1, bias1, w2, scale2, bias2 = params
    B, Cin, H, W = x_nchw.shape
    Cout = w1.shape[-1]
    assert H % 2 == 0 and W % 2 == 0

    # NCHW -> NHWC -> lane-packed (B, H, W*Cin); the trailing reshape is a free bitcast.
    x = jnp.transpose(x_nchw, (0, 2, 3, 1)).astype(jnp.float32).reshape(B, H, W * Cin)

    m1 = _band_matrices(w1, W)                       # (3, W*Cin,  W*Cout)
    m2 = _band_matrices(w2, W)                       # (3, W*Cout, W*Cout)
    pe, po = _pool_selectors(W, Cout)                # (W*Cout, (W//2)*Cout)

    s1p = jnp.tile(scale1.astype(jnp.float32), W).reshape(1, W * Cout)
    b1p = jnp.tile(bias1.astype(jnp.float32), W).reshape(1, W * Cout)
    s2p = jnp.tile(scale2.astype(jnp.float32), W).reshape(1, W * Cout)
    b2p = jnp.tile(bias2.astype(jnp.float32), W).reshape(1, W * Cout)

    out_shape = (
        jax.ShapeDtypeStruct((B, H, W * Cout), jnp.float32),
        jax.ShapeDtypeStruct((B, H // 2, (W // 2) * Cout), jnp.float32),
    )

    conv_packed, pool_packed = pl.pallas_call(
        _down_kernel,
        out_shape=out_shape,
        grid_spec=pltpu.PrefetchScalarGridSpec(
            num_scalar_prefetch=0,
            grid=(B,),
            in_specs=[
                pl.BlockSpec((1, H, W * Cin), lambda b: (b, 0, 0)),
                pl.BlockSpec((3, W * Cin, W * Cout), lambda b: (0, 0, 0)),
                pl.BlockSpec((1, W * Cout), lambda b: (0, 0)),
                pl.BlockSpec((1, W * Cout), lambda b: (0, 0)),
                pl.BlockSpec((3, W * Cout, W * Cout), lambda b: (0, 0, 0)),
                pl.BlockSpec((1, W * Cout), lambda b: (0, 0)),
                pl.BlockSpec((1, W * Cout), lambda b: (0, 0)),
                pl.BlockSpec((W * Cout, (W // 2) * Cout), lambda b: (0, 0)),
                pl.BlockSpec((W * Cout, (W // 2) * Cout), lambda b: (0, 0)),
            ],
            out_specs=(
                pl.BlockSpec((1, H, W * Cout), lambda b: (b, 0, 0)),
                pl.BlockSpec((1, H // 2, (W // 2) * Cout), lambda b: (b, 0, 0)),
            ),
            scratch_shapes=[
                pltpu.VMEM((H + 2, W * Cin), jnp.float32),
                pltpu.VMEM((H + 2, W * Cout), jnp.float32),
            ],
        ),
        compiler_params=pltpu.CompilerParams(
            dimension_semantics=("parallel",),
            vmem_limit_bytes=32 * 1024 * 1024),
    )(x, m1, s1p, b1p, m2, s2p, b2p, pe, po)

    # free bitcast reshapes back to NHWC, then to PyTorch's NCHW axis convention
    conv_block_out = jnp.transpose(conv_packed.reshape(B, H, W, Cout), (0, 3, 1, 2))
    encoder_output = jnp.transpose(
        pool_packed.reshape(B, H // 2, W // 2, Cout), (0, 3, 1, 2))
    return encoder_output, conv_block_out


def init_params(key, in_c, out_c, eps=1e-5):
    """Deterministic synthetic parameters; conv bias + inference BN folded to scale/bias."""
    def one_layer(k, cin, cout):
        kw, kb, kg, kbe, km, kv = jax.random.split(k, 6)
        w = 0.1 * jax.random.normal(kw, (3, 3, cin, cout), jnp.float32)   # HWIO
        conv_b = 0.05 * jax.random.normal(kb, (cout,), jnp.float32)
        gamma = 1.0 + 0.1 * jax.random.normal(kg, (cout,), jnp.float32)
        beta = 0.05 * jax.random.normal(kbe, (cout,), jnp.float32)
        mean = 0.02 * jax.random.normal(km, (cout,), jnp.float32)
        var = 1.0 + 0.1 * jnp.abs(jax.random.normal(kv, (cout,), jnp.float32))
        scale = gamma * jax.lax.rsqrt(var + eps)
        bias = (conv_b - mean) * scale + beta
        return w, scale, bias

    k1, k2 = jax.random.split(key)
    w1, s1, b1 = one_layer(k1, in_c, out_c)
    w2, s2, b2 = one_layer(k2, out_c, out_c)
    return (w1, s1, b1, w2, s2, b2)


def _ref_forward(x_nchw, w1, s1, b1, w2, s2, b2):
    """Pure-JAX reference (same math) for correctness checking."""
    x = jnp.transpose(x_nchw, (0, 2, 3, 1))
    conv = functools.partial(
        jax.lax.conv_general_dilated, window_strides=(1, 1), padding="SAME",
        dimension_numbers=("NHWC", "HWIO", "NHWC"))
    y1 = jnp.maximum(conv(x, w1) * s1.reshape(1, 1, 1, -1) + b1.reshape(1, 1, 1, -1), 0.0)
    y2 = jnp.maximum(conv(y1, w2) * s2.reshape(1, 1, 1, -1) + b2.reshape(1, 1, 1, -1), 0.0)
    pooled = jax.lax.reduce_window(y2, -jnp.inf, jax.lax.max,
                                   (1, 2, 2, 1), (1, 2, 2, 1), "VALID")
    return jnp.transpose(pooled, (0, 3, 1, 2)), jnp.transpose(y2, (0, 3, 1, 2))


if __name__ == "__main__":
    B, Cin, Cout, H, W = 2, 4, 8, 16, 16
    key = jax.random.PRNGKey(0)
    k_x, k_p = jax.random.split(key)
    x = jax.random.normal(k_x, (B, Cin, H, W), jnp.float32)   # PyTorch NCHW input
    params = init_params(k_p, Cin, Cout)

    encoder_output, conv_block_out = down_forward(x, params)
    jax.block_until_ready((encoder_output, conv_block_out))

    assert encoder_output.shape == (B, Cout, H // 2, W // 2)
    assert conv_block_out.shape == (B, Cout, H, W)

    enc_ref, conv_ref = _ref_forward(x, *params)
    assert jnp.allclose(conv_block_out, conv_ref, atol=1e-3, rtol=1e-3)
    assert jnp.allclose(encoder_output, enc_ref, atol=1e-3, rtol=1e-3)

    print("KERNEL_OK")
</pallas_src>

<mosaic_0001>
module attributes {stable_mosaic.version = 11 : i64} {
  func.func @_down_kernel(%arg0: i32, %arg1: memref<1x16x64xf32, #tpu.memory_space<vmem>>, %arg2: memref<3x64x128xf32, #tpu.memory_space<vmem>>, %arg3: memref<1x128xf32, #tpu.memory_space<vmem>>, %arg4: memref<1x128xf32, #tpu.memory_space<vmem>>, %arg5: memref<3x128x128xf32, #tpu.memory_space<vmem>>, %arg6: memref<1x128xf32, #tpu.memory_space<vmem>>, %arg7: memref<1x128xf32, #tpu.memory_space<vmem>>, %arg8: memref<128x64xf32, #tpu.memory_space<vmem>>, %arg9: memref<128x64xf32, #tpu.memory_space<vmem>>, %arg10: memref<1x16x128xf32, #tpu.memory_space<vmem>>, %arg11: memref<1x8x64xf32, #tpu.memory_space<vmem>>, %arg12: memref<18x64xf32, #tpu.memory_space<vmem>>, %arg13: memref<18x128xf32, #tpu.memory_space<vmem>>) attributes {dimension_semantics = [#tpu.dimension_semantics<parallel>], iteration_bounds = array<i64: 2>, scalar_prefetch = 0 : i64, scratch_operands = 2 : i64, tpu.core_type = #tpu.core_type<tc>, window_params = [{transform_indices = @transform_0, window_bounds = array<i64: 1, 16, 64>}, {pipeline_mode = #tpu.pipeline_mode<synchronous>, transform_indices = @transform_1, window_bounds = array<i64: 3, 64, 128>}, {pipeline_mode = #tpu.pipeline_mode<synchronous>, transform_indices = @transform_2, window_bounds = array<i64: 1, 128>}, {pipeline_mode = #tpu.pipeline_mode<synchronous>, transform_indices = @transform_3, window_bounds = array<i64: 1, 128>}, {pipeline_mode = #tpu.pipeline_mode<synchronous>, transform_indices = @transform_4, window_bounds = array<i64: 3, 128, 128>}, {pipeline_mode = #tpu.pipeline_mode<synchronous>, transform_indices = @transform_5, window_bounds = array<i64: 1, 128>}, {pipeline_mode = #tpu.pipeline_mode<synchronous>, transform_indices = @transform_6, window_bounds = array<i64: 1, 128>}, {pipeline_mode = #tpu.pipeline_mode<synchronous>, transform_indices = @transform_7, window_bounds = array<i64: 128, 64>}, {pipeline_mode = #tpu.pipeline_mode<synchronous>, transform_indices = @transform_8, window_bounds = array<i64: 128, 64>}, {transform_indices = @transform_9, window_bounds = array<i64: 1, 16, 128>}, {transform_indices = @transform_10, window_bounds = array<i64: 1, 8, 64>}]} {
    %cst = arith.constant 0.000000e+00 : f32
    %0 = vector.broadcast %cst : f32 to vector<1x64xf32>
    %c0 = arith.constant 0 : index
    %c0_0 = arith.constant 0 : index
    %1 = vector.load %arg12[%c0, %c0_0] : memref<18x64xf32, #tpu.memory_space<vmem>>, vector<1x64xf32>
    tpu.vector_store %arg12[%c0, %c0_0], %0 {strides = array<i32>} : memref<18x64xf32, #tpu.memory_space<vmem>>, vector<1x64xf32>,
    %cst_1 = arith.constant 0.000000e+00 : f32
    %2 = vector.broadcast %cst_1 : f32 to vector<1x64xf32>
    %c17 = arith.constant 17 : index
    %c0_2 = arith.constant 0 : index
    %3 = vector.load %arg12[%c17, %c0_2] : memref<18x64xf32, #tpu.memory_space<vmem>>, vector<1x64xf32>
    tpu.vector_store %arg12[%c17, %c0_2], %2 {strides = array<i32>} : memref<18x64xf32, #tpu.memory_space<vmem>>, vector<1x64xf32>,
    %c0_3 = arith.constant 0 : index
    %c0_4 = arith.constant 0 : index
    %c0_5 = arith.constant 0 : index
    %4 = vector.load %arg1[%c0_3, %c0_4, %c0_5] : memref<1x16x64xf32, #tpu.memory_space<vmem>>, vector<1x16x64xf32>
    %5 = vector.shape_cast %4 : vector<1x16x64xf32> to vector<16x64xf32>
    %c1 = arith.constant 1 : index
    %c0_6 = arith.constant 0 : index
    %6 = vector.load %arg12[%c1, %c0_6] : memref<18x64xf32, #tpu.memory_space<vmem>>, vector<16x64xf32>
    tpu.vector_store %arg12[%c1, %c0_6], %5 {strides = array<i32>} : memref<18x64xf32, #tpu.memory_space<vmem>>, vector<16x64xf32>,
    %c0_7 = arith.constant 0 : index
    %c0_8 = arith.constant 0 : index
    %7 = vector.load %arg12[%c0_7, %c0_8] : memref<18x64xf32, #tpu.memory_space<vmem>>, vector<16x64xf32>
    %c0_9 = arith.constant 0 : index
    %c0_10 = arith.constant 0 : index
    %c0_11 = arith.constant 0 : index
    %8 = vector.load %arg2[%c0_9, %c0_10, %c0_11] : memref<3x64x128xf32, #tpu.memory_space<vmem>>, vector<1x64x128xf32>
    %9 = vector.shape_cast %8 : vector<1x64x128xf32> to vector<64x128xf32>
    %cst_12 = arith.constant dense<0.000000e+00> : vector<16x128xf32>
    %10 = tpu.matmul %7, %9, %cst_12 {dimension_numbers = #tpu.dot_dimension_numbers<[1], [0], [0], [1], [0, 0, 1, 1], [], []>} : vector<16x64xf32>, vector<64x128xf32>, vector<16x128xf32> -> vector<16x128xf32>
    %c1_13 = arith.constant 1 : index
    %c0_14 = arith.constant 0 : index
    %11 = vector.load %arg12[%c1_13, %c0_14] : memref<18x64xf32, #tpu.memory_space<vmem>>, vector<16x64xf32>
    %c1_15 = arith.constant 1 : index
    %c0_16 = arith.constant 0 : index
    %c0_17 = arith.constant 0 : index
    %12 = vector.load %arg2[%c1_15, %c0_16, %c0_17] : memref<3x64x128xf32, #tpu.memory_space<vmem>>, vector<1x64x128xf32>
    %13 = vector.shape_cast %12 : vector<1x64x128xf32> to vector<64x128xf32>
    %cst_18 = arith.constant dense<0.000000e+00> : vector<16x128xf32>
    %14 = tpu.matmul %11, %13, %cst_18 {dimension_numbers = #tpu.dot_dimension_numbers<[1], [0], [0], [1], [0, 0, 1, 1], [], []>} : vector<16x64xf32>, vector<64x128xf32>, vector<16x128xf32> -> vector<16x128xf32>
    %15 = arith.addf %10, %14 : vector<16x128xf32>
    %c2 = arith.constant 2 : index
    %c0_19 = arith.constant 0 : index
    %16 = vector.load %arg12[%c2, %c0_19] : memref<18x64xf32, #tpu.memory_space<vmem>>, vector<16x64xf32>
    %c2_20 = arith.constant 2 : index
    %c0_21 = arith.constant 0 : index
    %c0_22 = arith.constant 0 : index
    %17 = vector.load %arg2[%c2_20, %c0_21, %c0_22] : memref<3x64x128xf32, #tpu.memory_space<vmem>>, vector<1x64x128xf32>
    %18 = vector.shape_cast %17 : vector<1x64x128xf32> to vector<64x128xf32>
    %cst_23 = arith.constant dense<0.000000e+00> : vector<16x128xf32>
    %19 = tpu.matmul %16, %18, %cst_23 {dimension_numbers = #tpu.dot_dimension_numbers<[1], [0], [0], [1], [0, 0, 1, 1], [], []>} : vector<16x64xf32>, vector<64x128xf32>, vector<16x128xf32> -> vector<16x128xf32>
    %20 = arith.addf %15, %19 : vector<16x128xf32>
    %c0_24 = arith.constant 0 : index
    %c0_25 = arith.constant 0 : index
    %21 = vector.load %arg3[%c0_24, %c0_25] : memref<1x128xf32, #tpu.memory_space<vmem>>, vector<1x128xf32>
    %22 = vector.broadcast %21 : vector<1x128xf32> to vector<16x128xf32>
    %23 = arith.mulf %20, %22 : vector<16x128xf32>
    %c0_26 = arith.constant 0 : index
    %c0_27 = arith.constant 0 : index
    %24 = vector.load %arg4[%c0_26, %c0_27] : memref<1x128xf32, #tpu.memory_space<vmem>>, vector<1x128xf32>
    %25 = vector.broadcast %24 : vector<1x128xf32> to vector<16x128xf32>
    %26 = arith.addf %23, %25 : vector<16x128xf32>
    %cst_28 = arith.constant 0.000000e+00 : f32
    %27 = vector.broadcast %cst_28 : f32 to vector<16x128xf32>
    %28 = arith.maximumf %26, %27 : vector<16x128xf32>
    %cst_29 = arith.constant 0.000000e+00 : f32
    %29 = vector.broadcast %cst_29 : f32 to vector<1x128xf32>
    %c0_30 = arith.constant 0 : index
    %c0_31 = arith.constant 0 : index
    %30 = vector.load %arg13[%c0_30, %c0_31] : memref<18x128xf32, #tpu.memory_space<vmem>>, vector<1x128xf32>
    tpu.vector_store %arg13[%c0_30, %c0_31], %29 {strides = array<i32>} : memref<18x128xf32, #tpu.memory_space<vmem>>, vector<1x128xf32>,
    %cst_32 = arith.constant 0.000000e+00 : f32
    %31 = vector.broadcast %cst_32 : f32 to vector<1x128xf32>
    %c17_33 = arith.constant 17 : index
    %c0_34 = arith.constant 0 : index
    %32 = vector.load %arg13[%c17_33, %c0_34] : memref<18x128xf32, #tpu.memory_space<vmem>>, vector<1x128xf32>
    tpu.vector_store %arg13[%c17_33, %c0_34], %31 {strides = array<i32>} : memref<18x128xf32, #tpu.memory_space<vmem>>, vector<1x128xf32>,
    %c1_35 = arith.constant 1 : index
    %c0_36 = arith.constant 0 : index
    %33 = vector.load %arg13[%c1_35, %c0_36] : memref<18x128xf32, #tpu.memory_space<vmem>>, vector<16x128xf32>
    tpu.vector_store %arg13[%c1_35, %c0_36], %28 {strides = array<i32>} : memref<18x128xf32, #tpu.memory_space<vmem>>, vector<16x128xf32>,
    %c0_37 = arith.constant 0 : index
    %c0_38 = arith.constant 0 : index
    %34 = vector.load %arg13[%c0_37, %c0_38] : memref<18x128xf32, #tpu.memory_space<vmem>>, vector<16x128xf32>
    %c0_39 = arith.constant 0 : index
    %c0_40 = arith.constant 0 : index
    %c0_41 = arith.constant 0 : index
    %35 = vector.load %arg5[%c0_39, %c0_40, %c0_41] : memref<3x128x128xf32, #tpu.memory_space<vmem>>, vector<1x128x128xf32>
    %36 = vector.shape_cast %35 : vector<1x128x128xf32> to vector<128x128xf32>
    %cst_42 = arith.constant dense<0.000000e+00> : vector<16x128xf32>
    %37 = tpu.matmul %34, %36, %cst_42 {dimension_numbers = #tpu.dot_dimension_numbers<[1], [0], [0], [1], [0, 0, 1, 1], [], []>} : vector<16x128xf32>, vector<128x128xf32>, vector<16x128xf32> -> vector<16x128xf32>
    %c1_43 = arith.constant 1 : index
    %c0_44 = arith.constant 0 : index
    %38 = vector.load %arg13[%c1_43, %c0_44] : memref<18x128xf32, #tpu.memory_space<vmem>>, vector<16x128xf32>
    %c1_45 = arith.constant 1 : index
    %c0_46 = arith.constant 0 : index
    %c0_47 = arith.constant 0 : index
    %39 = vector.load %arg5[%c1_45, %c0_46, %c0_47] : memref<3x128x128xf32, #tpu.memory_space<vmem>>, vector<1x128x128xf32>
    %40 = vector.shape_cast %39 : vector<1x128x128xf32> to vector<128x128xf32>
    %cst_48 = arith.constant dense<0.000000e+00> : vector<16x128xf32>
    %41 = tpu.matmul %38, %40, %cst_48 {dimension_numbers = #tpu.dot_dimension_numbers<[1], [0], [0], [1], [0, 0, 1, 1], [], []>} : vector<16x128xf32>, vector<128x128xf32>, vector<16x128xf32> -> vector<16x128xf32>
    %42 = arith.addf %37, %41 : vector<16x128xf32>
    %c2_49 = arith.constant 2 : index
    %c0_50 = arith.constant 0 : index
    %43 = vector.load %arg13[%c2_49, %c0_50] : memref<18x128xf32, #tpu.memory_space<vmem>>, vector<16x128xf32>
    %c2_51 = arith.constant 2 : index
    %c0_52 = arith.constant 0 : index
    %c0_53 = arith.constant 0 : index
    %44 = vector.load %arg5[%c2_51, %c0_52, %c0_53] : memref<3x128x128xf32, #tpu.memory_space<vmem>>, vector<1x128x128xf32>
    %45 = vector.shape_cast %44 : vector<1x128x128xf32> to vector<128x128xf32>
    %cst_54 = arith.constant dense<0.000000e+00> : vector<16x128xf32>
    %46 = tpu.matmul %43, %45, %cst_54 {dimension_numbers = #tpu.dot_dimension_numbers<[1], [0], [0], [1], [0, 0, 1, 1], [], []>} : vector<16x128xf32>, vector<128x128xf32>, vector<16x128xf32> -> vector<16x128xf32>
    %47 = arith.addf %42, %46 : vector<16x128xf32>
    %c0_55 = arith.constant 0 : index
    %c0_56 = arith.constant 0 : index
    %48 = vector.load %arg6[%c0_55, %c0_56] : memref<1x128xf32, #tpu.memory_space<vmem>>, vector<1x128xf32>
    %49 = vector.broadcast %48 : vector<1x128xf32> to vector<16x128xf32>
    %50 = arith.mulf %47, %49 : vector<16x128xf32>
    %c0_57 = arith.constant 0 : index
    %c0_58 = arith.constant 0 : index
    %51 = vector.load %arg7[%c0_57, %c0_58] : memref<1x128xf32, #tpu.memory_space<vmem>>, vector<1x128xf32>
    %52 = vector.broadcast %51 : vector<1x128xf32> to vector<16x128xf32>
    %53 = arith.addf %50, %52 : vector<16x128xf32>
    %cst_59 = arith.constant 0.000000e+00 : f32
    %54 = vector.broadcast %cst_59 : f32 to vector<16x128xf32>
    %55 = arith.maximumf %53, %54 : vector<16x128xf32>
    %c0_60 = arith.constant 0 : index
    %c0_61 = arith.constant 0 : index
    %c0_62 = arith.constant 0 : index
    %56 = vector.load %arg10[%c0_60, %c0_61, %c0_62] : memref<1x16x128xf32, #tpu.memory_space<vmem>>, vector<1x16x128xf32>
    %57 = vector.shape_cast %56 : vector<1x16x128xf32> to vector<16x128xf32>
    %58 = vector.shape_cast %55 : vector<16x128xf32> to vector<1x16x128xf32>
    tpu.vector_store %arg10[%c0_60, %c0_61, %c0_62], %58 {strides = array<i32>} : memref<1x16x128xf32, #tpu.memory_space<vmem>>, vector<1x16x128xf32>,
    %59 = vector.shape_cast %55 : vector<16x128xf32> to vector<8x2x128xf32>
    %60 = vector.extract_strided_slice %59 {offsets = [0, 0, 0], sizes = [8, 1, 128], strides = [1, 1, 1]} : vector<8x2x128xf32> to vector<8x1x128xf32>
    %61 = vector.shape_cast %60 : vector<8x1x128xf32> to vector<8x128xf32>
    %62 = vector.extract_strided_slice %59 {offsets = [0, 1, 0], sizes = [8, 1, 128], strides = [1, 1, 1]} : vector<8x2x128xf32> to vector<8x1x128xf32>
    %63 = vector.shape_cast %62 : vector<8x1x128xf32> to vector<8x128xf32>
    %64 = arith.maximumf %61, %63 : vector<8x128xf32>
    %c0_63 = arith.constant 0 : index
    %c0_64 = arith.constant 0 : index
    %65 = vector.load %arg8[%c0_63, %c0_64] : memref<128x64xf32, #tpu.memory_space<vmem>>, vector<128x64xf32>
    %cst_65 = arith.constant dense<0.000000e+00> : vector<8x64xf32>
    %66 = tpu.matmul %64, %65, %cst_65 {dimension_numbers = #tpu.dot_dimension_numbers<[1], [0], [0], [1], [0, 0, 1, 1], [], []>} : vector<8x128xf32>, vector<128x64xf32>, vector<8x64xf32> -> vector<8x64xf32>
    %c0_66 = arith.constant 0 : index
    %c0_67 = arith.constant 0 : index
    %67 = vector.load %arg9[%c0_66, %c0_67] : memref<128x64xf32, #tpu.memory_space<vmem>>, vector<128x64xf32>
    %cst_68 = arith.constant dense<0.000000e+00> : vector<8x64xf32>
    %68 = tpu.matmul %64, %67, %cst_68 {dimension_numbers = #tpu.dot_dimension_numbers<[1], [0], [0], [1], [0, 0, 1, 1], [], []>} : vector<8x128xf32>, vector<128x64xf32>, vector<8x64xf32> -> vector<8x64xf32>
    %69 = arith.maximumf %66, %68 : vector<8x64xf32>
    %c0_69 = arith.constant 0 : index
    %c0_70 = arith.constant 0 : index
    %c0_71 = arith.constant 0 : index
    %70 = vector.load %arg11[%c0_69, %c0_70, %c0_71] : memref<1x8x64xf32, #tpu.memory_space<vmem>>, vector<1x8x64xf32>
    %71 = vector.shape_cast %70 : vector<1x8x64xf32> to vector<8x64xf32>
    %72 = vector.shape_cast %69 : vector<8x64xf32> to vector<1x8x64xf32>
    tpu.vector_store %arg11[%c0_69, %c0_70, %c0_71], %72 {strides = array<i32>} : memref<1x8x64xf32, #tpu.memory_space<vmem>>, vector<1x8x64xf32>,
    return
  }
  func.func @transform_0(%arg0: i32) -> (i32, i32, i32) {
    %c0_i32 = arith.constant 0 : i32
    %c0_i32_0 = arith.constant 0 : i32
    %c0_i32_1 = arith.constant 0 : i32
    return %arg0, %c0_i32, %c0_i32_0 : i32, i32, i32
  }
  func.func @transform_1(%arg0: i32) -> (i32, i32, i32) {
    %c0_i32 = arith.constant 0 : i32
    %c0_i32_0 = arith.constant 0 : i32
    %c0_i32_1 = arith.constant 0 : i32
    %c0_i32_2 = arith.constant 0 : i32
    return %c0_i32, %c0_i32_0, %c0_i32_1 : i32, i32, i32
  }
  func.func @transform_2(%arg0: i32) -> (i32, i32) {
    %c0_i32 = arith.constant 0 : i32
    %c0_i32_0 = arith.constant 0 : i32
    %c0_i32_1 = arith.constant 0 : i32
    return %c0_i32, %c0_i32_0 : i32, i32
  }
  func.func @transform_3(%arg0: i32) -> (i32, i32) {
    %c0_i32 = arith.constant 0 : i32
    %c0_i32_0 = arith.constant 0 : i32
    %c0_i32_1 = arith.constant 0 : i32
    return %c0_i32, %c0_i32_0 : i32, i32
  }
  func.func @transform_4(%arg0: i32) -> (i32, i32, i32) {
    %c0_i32 = arith.constant 0 : i32
    %c0_i32_0 = arith.constant 0 : i32
    %c0_i32_1 = arith.constant 0 : i32
    %c0_i32_2 = arith.constant 0 : i32
    return %c0_i32, %c0_i32_0, %c0_i32_1 : i32, i32, i32
  }
  func.func @transform_5(%arg0: i32) -> (i32, i32) {
    %c0_i32 = arith.constant 0 : i32
    %c0_i32_0 = arith.constant 0 : i32
    %c0_i32_1 = arith.constant 0 : i32
    return %c0_i32, %c0_i32_0 : i32, i32
  }
  func.func @transform_6(%arg0: i32) -> (i32, i32) {
    %c0_i32 = arith.constant 0 : i32
    %c0_i32_0 = arith.constant 0 : i32
    %c0_i32_1 = arith.constant 0 : i32
    return %c0_i32, %c0_i32_0 : i32, i32
  }
  func.func @transform_7(%arg0: i32) -> (i32, i32) {
    %c0_i32 = arith.constant 0 : i32
    %c0_i32_0 = arith.constant 0 : i32
    %c0_i32_1 = arith.constant 0 : i32
    return %c0_i32, %c0_i32_0 : i32, i32
  }
  func.func @transform_8(%arg0: i32) -> (i32, i32) {
    %c0_i32 = arith.constant 0 : i32
    %c0_i32_0 = arith.constant 0 : i32
    %c0_i32_1 = arith.constant 0 : i32
    return %c0_i32, %c0_i32_0 : i32, i32
  }
  func.func @transform_9(%arg0: i32) -> (i32, i32, i32) {
    %c0_i32 = arith.constant 0 : i32
    %c0_i32_0 = arith.constant 0 : i32
    %c0_i32_1 = arith.constant 0 : i32
    return %arg0, %c0_i32, %c0_i32_0 : i32, i32, i32
  }
  func.func @transform_10(%arg0: i32) -> (i32, i32, i32) {
    %c0_i32 = arith.constant 0 : i32
    %c0_i32_0 = arith.constant 0 : i32
    %c0_i32_1 = arith.constant 0 : i32
    return %arg0, %c0_i32, %c0_i32_0 : i32, i32, i32
  }
}

</mosaic_0001>

<llo_original>
// kernel: tpu_custom_call.1
$region0: #{tpu_custom_call.1}
  #allocation0 [shape = 'u32[]', space=smem, size = 0x4, offset = 0x4, fixed_abs, tag = 'smem constant byte address 0x4 - core index']
  #allocation1 [shape = 'u32[144,128]{1,0:T(1,128)}', space=vmem, size = 0x12000, scoped, tag = 'internal scratch']
  #allocation2 [shape = 'f32[18,64]{1,0:T(8,128)}', space=vmem, size = 0x3000, scoped, tag = 'scratch operand']
  #allocation3 [shape = 'f32[18,128]{1,0:T(8,128)}', space=vmem, size = 0x3000, scoped, tag = 'scratch operand']
  %s0 = inlined_call_operand.hbm [shape: f32[2,16,64], index: 0, kind: input, shape index: {}]
  %s1 = inlined_call_operand.hbm [shape: f32[3,64,128], index: 1, kind: input, shape index: {}]
  %s2 = inlined_call_operand.vmem [shape: f32[1,128], index: 2, kind: input, shape index: {}]
  %s3 = inlined_call_operand.vmem [shape: f32[1,128], index: 3, kind: input, shape index: {}]
  %s4 = inlined_call_operand.vmem [shape: f32[3,128,128], index: 4, kind: input, shape index: {}]
  %s5 = inlined_call_operand.vmem [shape: f32[1,128], index: 5, kind: input, shape index: {}]
  %s6 = inlined_call_operand.vmem [shape: f32[1,128], index: 6, kind: input, shape index: {}]
  %s7 = inlined_call_operand.vmem [shape: f32[128,64], index: 7, kind: input, shape index: {}]
  %s8 = inlined_call_operand.vmem [shape: f32[128,64], index: 8, kind: input, shape index: {}]
  %s9 = inlined_call_operand.hbm [shape: f32[2,16,128], index: 9, kind: output, shape index: {0}]
  %s10 = inlined_call_operand.hbm [shape: f32[2,8,64], index: 10, kind: output, shape index: {1}]
  %11 = xla_tuple %s9, %s10
  %s12 = sld [smem:[#allocation0]]
  $region85: #{tpu_custom_call.1} parent=0
    _
  %s14 = ssub.s32 1, %s12
  %s15 = scalar_select 0, %s14, %s12
  $region1: #{tpu_custom_call.1} parent=0
    #allocation4 [shape = 'u8[16384]{0}', space=vmem, size = 0x4000, scoped, tag = 'input window, operand 0']
    #allocation5 [shape = 's32[2]{0}', space=sflag, size = 0x8, scoped, tag = 'scoped memory for tpu_custom_call.1']
    #allocation6 [shape = 's32[2]{0}', space=sflag, size = 0x8, scoped, tag = 'scoped memory for tpu_custom_call.1']
    #allocation7 [shape = 'u8[98304]{0}', space=vmem, size = 0x18000, scoped, tag = 'input window, operand 1, single buffered']
    #allocation8 [shape = 's32[1]{0}', space=sflag, size = 0x4, scoped, tag = 'scoped memory for tpu_custom_call.1']
    #allocation9 [shape = 'u8[16384]{0}', space=vmem, size = 0x4000, scoped, tag = 'output window, operand 0']
    #allocation10 [shape = 'u8[8192]{0}', space=vmem, size = 0x2000, scoped, tag = 'output window, operand 1']
    #allocation11 [shape = 's32[2]{0}', space=sflag, size = 0x8, scoped, tag = 'scoped memory for tpu_custom_call.1']
    %16 = vsyncpa [#allocation5], 0
    %s17 = scalar_lea.sflag [#allocation5], 1
    %18 = vsyncpa %s17, 0
    %19 = vsyncpa [#allocation8], 0
    %20 = vsyncpa [#allocation6], 0
    %s21 = scalar_lea.sflag [#allocation6], 1
    %22 = vsyncpa %s21, 0
    %23 = vsyncpa [#allocation11], 0
    %s24 = scalar_lea.sflag [#allocation11], 1
    %25 = vsyncpa %s24, 0
    loop: start=0, step=1, limit=4
    $region2: #{tpu_custom_call.1} parent=1 // loop_pre_header
      _
    $region3: #{tpu_custom_call.1} parent=1 // loop_header
      %s27 = sphi 0, %s31
      %p28 = scmp.ge.s32.totalorder %s27, 4
      %s37 = sphi 0, %s39
      %s40 = sphi 0, %s37
      %s41 = sphi 0, %s40
      %s57 = sphi 0, %s41
      %s61 = sphi 0, %s61
      %s63 = sphi 0, %s61
      %s64 = sphi 0, %s63
      %s78 = sphi 0, %s64
      %s82 = sphi 0, %s82
      %s84 = sphi 0, %s82
      %s85 = sphi 0, %s84
      %s99 = sphi 0, %s85
      %s103 = sphi 0, %s103
      %s105 = sphi 0, %s103
      %s106 = sphi 0, %s105
      %s120 = sphi 0, %s106
      %s124 = sphi 0, %s124
      %s126 = sphi 0, %s124
      %s127 = sphi 0, %s126
      %s141 = sphi 0, %s127
      %s145 = sphi 0, %s145
      %s147 = sphi 0, %s145
      %s148 = sphi 0, %s147
      %s162 = sphi 0, %s148
      %s166 = sphi 0, %s166
      %s168 = sphi 0, %s166
      %s169 = sphi 0, %s168
      %s183 = sphi 0, %s169
      %s187 = sphi 0, %s187
      %s189 = sphi 0, %s187
      %s190 = sphi 0, %s189
      %s204 = sphi 0, %s190
      %s208 = sphi 0, %s208
      %s210 = sphi 0, %s208
      %s211 = sphi 0, %s210
      %s225 = sphi 0, %s211
      %s231 = sphi 0, %s233
      %s234 = sphi 0, %s231
      %s235 = sphi 0, %s234
      %s251 = sphi 0, %s235
      %s257 = sphi 0, %s259
      %s260 = sphi 0, %s257
      %s261 = sphi 0, %s260
      %s277 = sphi 0, %s261
    $region4: #{tpu_custom_call.1} parent=1 // loop_header_branch
      %30 = sbr.rel (%p28) target = $region8
    $region5: #{tpu_custom_call.1} parent=1 // loop_body
      %s32 = ssub.s32 %s27, 1
      %s33 = ssub.s32 %s27, 2
      %s34 = sadd.s32 %s27, 1
      %s35 = ssub.s32 %s27, %s34
      %p36 = scmp.eq.s32.totalorder %s35, 0
      %s38 = sadd.s32 %s37, 1
      %s39 = scalar_select %p36, %s37, %s38
      %p42 = pneg %p36
      %p43 = scmp.eq.s32.totalorder %s27, 1
      %p44 = por %p42, %p43
      %p45 = scmp.ne.s32.totalorder %s37, %s40
      %p46 = scmp.eq.s32.totalorder %s27, 0
      %p47 = por %p45, %p46
      %p48 = scmp.ne.s32.totalorder %s37, %s40
      %p49 = scmp.eq.s32.totalorder %s32, 1
      %p50 = por %p48, %p49
      %p51 = scmp.ne.s32.totalorder %s40, %s41
      %p52 = scmp.eq.s32.totalorder %s32, 0
      %p53 = por %p51, %p52
      %p54 = scmp.ne.s32.totalorder %s40, %s41
      %p55 = scmp.eq.s32.totalorder %s33, 1
      %p56 = por %p54, %p55
      %p58 = scmp.ne.s32.totalorder %s41, %s57
      %p59 = scmp.eq.s32.totalorder %s33, 0
      %p60 = por %p58, %p59
      %s62 = sadd.s32 %s61, 1
      %p65 = scmp.eq.s32.totalorder %s27, 1
      %p66 = scmp.ne.s32.totalorder %s61, %s63
      %p67 = scmp.eq.s32.totalorder %s27, 0
      %p68 = por %p66, %p67
      %p69 = scmp.ne.s32.totalorder %s61, %s63
      %p70 = scmp.eq.s32.totalorder %s32, 1
      %p71 = por %p69, %p70
      %p72 = scmp.ne.s32.totalorder %s63, %s64
      %p73 = scmp.eq.s32.totalorder %s32, 0
      %p74 = por %p72, %p73
      %p75 = scmp.ne.s32.totalorder %s63, %s64
      %p76 = scmp.eq.s32.totalorder %s33, 1
      %p77 = por %p75, %p76
      %p79 = scmp.ne.s32.totalorder %s64, %s78
      %p80 = scmp.eq.s32.totalorder %s33, 0
      %p81 = por %p79, %p80
      %s83 = sadd.s32 %s82, 1
      %p86 = scmp.eq.s32.totalorder %s27, 1
      %p87 = scmp.ne.s32.totalorder %s82, %s84
      %p88 = scmp.eq.s32.totalorder %s27, 0
      %p89 = por %p87, %p88
      %p90 = scmp.ne.s32.totalorder %s82, %s84
      %p91 = scmp.eq.s32.totalorder %s32, 1
      %p92 = por %p90, %p91
      %p93 = scmp.ne.s32.totalorder %s84, %s85
      %p94 = scmp.eq.s32.totalorder %s32, 0
      %p95 = por %p93, %p94
      %p96 = scmp.ne.s32.totalorder %s84, %s85
      %p97 = scmp.eq.s32.totalorder %s33, 1
      %p98 = por %p96, %p97
      %p100 = scmp.ne.s32.totalorder %s85, %s99
      %p101 = scmp.eq.s32.totalorder %s33, 0
      %p102 = por %p100, %p101
      %s104 = sadd.s32 %s103, 1
      %p107 = scmp.eq.s32.totalorder %s27, 1
      %p108 = scmp.ne.s32.totalorder %s103, %s105
      %p109 = scmp.eq.s32.totalorder %s27, 0
      %p110 = por %p108, %p109
      %p111 = scmp.ne.s32.totalorder %s103, %s105
      %p112 = scmp.eq.s32.totalorder %s32, 1
      %p113 = por %p111, %p112
      %p114 = scmp.ne.s32.totalorder %s105, %s106
      %p115 = scmp.eq.s32.totalorder %s32, 0
      %p116 = por %p114, %p115
      %p117 = scmp.ne.s32.totalorder %s105, %s106
      %p118 = scmp.eq.s32.totalorder %s33, 1
      %p119 = por %p117, %p118
      %p121 = scmp.ne.s32.totalorder %s106, %s120
      %p122 = scmp.eq.s32.totalorder %s33, 0
      %p123 = por %p121, %p122
      %s125 = sadd.s32 %s124, 1
      %p128 = scmp.eq.s32.totalorder %s27, 1
      %p129 = scmp.ne.s32.totalorder %s124, %s126
      %p130 = scmp.eq.s32.totalorder %s27, 0
      %p131 = por %p129, %p130
      %p132 = scmp.ne.s32.totalorder %s124, %s126
      %p133 = scmp.eq.s32.totalorder %s32, 1
      %p134 = por %p132, %p133
      %p135 = scmp.ne.s32.totalorder %s126, %s127
      %p136 = scmp.eq.s32.totalorder %s32, 0
      %p137 = por %p135, %p136
      %p138 = scmp.ne.s32.totalorder %s126, %s127
      %p139 = scmp.eq.s32.totalorder %s33, 1
      %p140 = por %p138, %p139
      %p142 = scmp.ne.s32.totalorder %s127, %s141
      %p143 = scmp.eq.s32.totalorder %s33, 0
      %p144 = por %p142, %p143
      %s146 = sadd.s32 %s145, 1
      %p149 = scmp.eq.s32.totalorder %s27, 1
      %p150 = scmp.ne.s32.totalorder %s145, %s147
      %p151 = scmp.eq.s32.totalorder %s27, 0
      %p152 = por %p150, %p151
      %p153 = scmp.ne.s32.totalorder %s145, %s147
      %p154 = scmp.eq.s32.totalorder %s32, 1
      %p155 = por %p153, %p154
      %p156 = scmp.ne.s32.totalorder %s147, %s148
      %p157 = scmp.eq.s32.totalorder %s32, 0
      %p158 = por %p156, %p157
      %p159 = scmp.ne.s32.totalorder %s147, %s148
      %p160 = scmp.eq.s32.totalorder %s33, 1
      %p161 = por %p159, %p160
      %p163 = scmp.ne.s32.totalorder %s148, %s162
      %p164 = scmp.eq.s32.totalorder %s33, 0
      %p165 = por %p163, %p164
      %s167 = sadd.s32 %s166, 1
      %p170 = scmp.eq.s32.totalorder %s27, 1
      %p171 = scmp.ne.s32.totalorder %s166, %s168
      %p172 = scmp.eq.s32.totalorder %s27, 0
      %p173 = por %p171, %p172
      %p174 = scmp.ne.s32.totalorder %s166, %s168
      %p175 = scmp.eq.s32.totalorder %s32, 1
      %p176 = por %p174, %p175
      %p177 = scmp.ne.s32.totalorder %s168, %s169
      %p178 = scmp.eq.s32.totalorder %s32, 0
      %p179 = por %p177, %p178
      %p180 = scmp.ne.s32.totalorder %s168, %s169
      %p181 = scmp.eq.s32.totalorder %s33, 1
      %p182 = por %p180, %p181
      %p184 = scmp.ne.s32.totalorder %s169, %s183
      %p185 = scmp.eq.s32.totalorder %s33, 0
      %p186 = por %p184, %p185
      %s188 = sadd.s32 %s187, 1
      %p191 = scmp.eq.s32.totalorder %s27, 1
      %p192 = scmp.ne.s32.totalorder %s187, %s189
      %p193 = scmp.eq.s32.totalorder %s27, 0
      %p194 = por %p192, %p193
      %p195 = scmp.ne.s32.totalorder %s187, %s189
      %p196 = scmp.eq.s32.totalorder %s32, 1
      %p197 = por %p195, %p196
      %p198 = scmp.ne.s32.totalorder %s189, %s190
      %p199 = scmp.eq.s32.totalorder %s32, 0
      %p200 = por %p198, %p199
      %p201 = scmp.ne.s32.totalorder %s189, %s190
      %p202 = scmp.eq.s32.totalorder %s33, 1
      %p203 = por %p201, %p202
      %p205 = scmp.ne.s32.totalorder %s190, %s204
      %p206 = scmp.eq.s32.totalorder %s33, 0
      %p207 = por %p205, %p206
      %s209 = sadd.s32 %s208, 1
      %p212 = scmp.eq.s32.totalorder %s27, 1
      %p213 = scmp.ne.s32.totalorder %s208, %s210
      %p214 = scmp.eq.s32.totalorder %s27, 0
      %p215 = por %p213, %p214
      %p216 = scmp.ne.s32.totalorder %s208, %s210
      %p217 = scmp.eq.s32.totalorder %s32, 1
      %p218 = por %p216, %p217
      %p219 = scmp.ne.s32.totalorder %s210, %s211
      %p220 = scmp.eq.s32.totalorder %s32, 0
      %p221 = por %p219, %p220
      %p222 = scmp.ne.s32.totalorder %s210, %s211
      %p223 = scmp.eq.s32.totalorder %s33, 1
      %p224 = por %p222, %p223
      %p226 = scmp.ne.s32.totalorder %s211, %s225
      %p227 = scmp.eq.s32.totalorder %s33, 0
      %p228 = por %p226, %p227
      %s229 = ssub.s32 %s27, %s34
      %p230 = scmp.eq.s32.totalorder %s229, 0
      %s232 = sadd.s32 %s231, 1
      %s233 = scalar_select %p230, %s231, %s232
      %p236 = pneg %p230
      %p237 = scmp.eq.s32.totalorder %s27, 1
      %p238 = por %p236, %p237
      %p239 = scmp.ne.s32.totalorder %s231, %s234
      %p240 = scmp.eq.s32.totalorder %s27, 0
      %p241 = por %p239, %p240
      %p242 = scmp.ne.s32.totalorder %s231, %s234
      %p243 = scmp.eq.s32.totalorder %s32, 1
      %p244 = por %p242, %p243
      %p245 = scmp.ne.s32.totalorder %s234, %s235
      %p246 = scmp.eq.s32.totalorder %s32, 0
      %p247 = por %p245, %p246
      %p248 = scmp.ne.s32.totalorder %s234, %s235
      %p249 = scmp.eq.s32.totalorder %s33, 1
      %p250 = por %p248, %p249
      %p252 = scmp.ne.s32.totalorder %s235, %s251
      %p253 = scmp.eq.s32.totalorder %s33, 0
      %p254 = por %p252, %p253
      %s255 = ssub.s32 %s27, %s34
      %p256 = scmp.eq.s32.totalorder %s255, 0
      %s258 = sadd.s32 %s257, 1
      %s259 = scalar_select %p256, %s257, %s258
      %p262 = pneg %p256
      %p263 = scmp.eq.s32.totalorder %s27, 1
      %p264 = por %p262, %p263
      %p265 = scmp.ne.s32.totalorder %s257, %s260
      %p266 = scmp.eq.s32.totalorder %s27, 0
      %p267 = por %p265, %p266
      %p268 = scmp.ne.s32.totalorder %s257, %s260
      %p269 = scmp.eq.s32.totalorder %s32, 1
      %p270 = por %p268, %p269
      %p271 = scmp.ne.s32.totalorder %s260, %s261
      %p272 = scmp.eq.s32.totalorder %s32, 0
      %p273 = por %p271, %p272
      %p274 = scmp.ne.s32.totalorder %s260, %s261
      %p275 = scmp.eq.s32.totalorder %s33, 1
      %p276 = por %p274, %p275
      %p278 = scmp.ne.s32.totalorder %s261, %s277
      %p279 = scmp.eq.s32.totalorder %s33, 0
      %p280 = por %p278, %p279
      %p281 = scmp.le.s32.totalorder 1, %s27
      %p282 = scmp.lt.s32.totalorder %s27, 3
      %p283 = pnand %p281, %p282
      %p284 = pneg %p283
      // Predicated region
      $region9: #{tpu_custom_call.1} parent=5 // pred_check
        _
      $region10: #{tpu_custom_call.1} parent=5 // pred_check_branch
        %286 = sbr.rel (%p283) target = $region12
      $region11: #{tpu_custom_call.1} parent=5 // pred_region
        %s287 = ssub.s32 %s27, 1
        // Predicated region
        $region13: #{tpu_custom_call.1} parent=11 // pred_check
          %p288 = pneg %p74
        $region14: #{tpu_custom_call.1} parent=11 // pred_check_branch
          %290 = sbr.rel (%p288) target = $region16
        $region15: #{tpu_custom_call.1} parent=11 // pred_region
          %s292 = ssub.s32 3072, 3072
          %293 = vsyncadd [#allocation8], %s292
          %s294 = sshll.u32 [#allocation7], 4
          %s295 = int_to_ptr.vmem [resolvable:$true] %s294
          %300 = dma.hbm_to_vmem [thread:$0]  %s1, 3072, %s295, [#allocation8], 128, 128, 8
        $region16: #{tpu_custom_call.1} parent=11 // pred_fallthru
          _
        // Predicated region
        $region17: #{tpu_custom_call.1} parent=11 // pred_check
          %p301 = pneg %p95
        $region18: #{tpu_custom_call.1} parent=11 // pred_check_branch
          %303 = sbr.rel (%p301) target = $region20
        $region19: #{tpu_custom_call.1} parent=11 // pred_region
          _
        $region20: #{tpu_custom_call.1} parent=11 // pred_fallthru
          _
        // Predicated region
        $region21: #{tpu_custom_call.1} parent=11 // pred_check
          %p304 = pneg %p116
        $region22: #{tpu_custom_call.1} parent=11 // pred_check_branch
          %306 = sbr.rel (%p304) target = $region24
        $region23: #{tpu_custom_call.1} parent=11 // pred_region
          _
        $region24: #{tpu_custom_call.1} parent=11 // pred_fallthru
          _
        // Predicated region
        $region25: #{tpu_custom_call.1} parent=11 // pred_check
          %p307 = pneg %p137
        $region26: #{tpu_custom_call.1} parent=11 // pred_check_branch
          %309 = sbr.rel (%p307) target = $region28
        $region27: #{tpu_custom_call.1} parent=11 // pred_region
          _
        $region28: #{tpu_custom_call.1} parent=11 // pred_fallthru
          _
        // Predicated region
        $region29: #{tpu_custom_call.1} parent=11 // pred_check
          %p310 = pneg %p158
        $region30: #{tpu_custom_call.1} parent=11 // pred_check_branch
          %312 = sbr.rel (%p310) target = $region32
        $region31: #{tpu_custom_call.1} parent=11 // pred_region
          _
        $region32: #{tpu_custom_call.1} parent=11 // pred_fallthru
          _
        // Predicated region
        $region33: #{tpu_custom_call.1} parent=11 // pred_check
          %p313 = pneg %p179
        $region34: #{tpu_custom_call.1} parent=11 // pred_check_branch
          %315 = sbr.rel (%p313) target = $region36
        $region35: #{tpu_custom_call.1} parent=11 // pred_region
          _
        $region36: #{tpu_custom_call.1} parent=11 // pred_fallthru
          _
        // Predicated region
        $region37: #{tpu_custom_call.1} parent=11 // pred_check
          %p316 = pneg %p200
        $region38: #{tpu_custom_call.1} parent=11 // pred_check_branch
          %318 = sbr.rel (%p316) target = $region40
        $region39: #{tpu_custom_call.1} parent=11 // pred_region
          _
        $region40: #{tpu_custom_call.1} parent=11 // pred_fallthru
          _
        // Predicated region
        $region41: #{tpu_custom_call.1} parent=11 // pred_check
          %p319 = pneg %p221
        $region42: #{tpu_custom_call.1} parent=11 // pred_check_branch
          %321 = sbr.rel (%p319) target = $region44
        $region43: #{tpu_custom_call.1} parent=11 // pred_region
          _
        $region44: #{tpu_custom_call.1} parent=11 // pred_fallthru
          _
      $region12: #{tpu_custom_call.1} parent=5 // pred_fallthru
        _
      %p322 = scmp.lt.s32.totalorder %s27, 2
      // Predicated region
      $region45: #{tpu_custom_call.1} parent=5 // pred_check
        %p323 = pneg %p322
      $region46: #{tpu_custom_call.1} parent=5 // pred_check_branch
        %325 = sbr.rel (%p323) target = $region48
      $region47: #{tpu_custom_call.1} parent=5 // pred_region
        // Predicated region
        $region49: #{tpu_custom_call.1} parent=47 // pred_check
          %p326 = pneg %p47
        $region50: #{tpu_custom_call.1} parent=47 // pred_check_branch
          %328 = sbr.rel (%p326) target = $region52
        $region51: #{tpu_custom_call.1} parent=47 // pred_region
          %s329 = sand.u32 %s37, 1
          %s330 = scalar_lea.sflag [#allocation5], %s329
          %s331 = sand.u32 %s37, 1
          %s332 = smul.addr %s331, 16
          %s333 = scalar_lea.vmem [#allocation4], %s332
          %s335 = ssub.s32 256, 256
          %336 = vsyncadd %s330, %s335
          %s337 = smul.addr %s27, 2
          %s338 = smul.addr %s337, 128
          %s339 = scalar_lea.hbm %s0, %s338
          %s340 = sshll.u32 %s333, 4
          %s341 = int_to_ptr.vmem [resolvable:$true] %s340
          %346 = dma.hbm_to_vmem [thread:$0]  %s339, 256, %s341, %s330, 128, 128, 8
        $region52: #{tpu_custom_call.1} parent=47 // pred_fallthru
          _
      $region48: #{tpu_custom_call.1} parent=5 // pred_fallthru
        _
      %p347 = scmp.le.s32.totalorder 1, %s27
      %p348 = scmp.lt.s32.totalorder %s27, 3
      %p349 = pnand %p347, %p348
      %p350 = pneg %p349
      // Predicated region
      $region53: #{tpu_custom_call.1} parent=5 // pred_check
        _
      $region54: #{tpu_custom_call.1} parent=5 // pred_check_branch
        %352 = sbr.rel (%p349) target = $region56
      $region55: #{tpu_custom_call.1} parent=5 // pred_region
        %s353 = ssub.s32 %s27, 1
        %s354 = sand.u32 %s40, 1
        %s355 = scalar_lea.sflag [#allocation5], %s354
        %s356 = sand.u32 %s40, 1
        %s357 = smul.addr %s356, 16
        %s358 = scalar_lea.vmem [#allocation4], %s357
        // Predicated region
        $region57: #{tpu_custom_call.1} parent=55 // pred_check
          %p359 = pneg %p53
        $region58: #{tpu_custom_call.1} parent=55 // pred_check_branch
          %361 = sbr.rel (%p359) target = $region60
        $region59: #{tpu_custom_call.1} parent=55 // pred_region
          %362 = dma.done %s355, 256
        $region60: #{tpu_custom_call.1} parent=55 // pred_fallthru
          _
        // Predicated region
        $region61: #{tpu_custom_call.1} parent=55 // pred_check
          %p363 = pneg %p74
        $region62: #{tpu_custom_call.1} parent=55 // pred_check_branch
          %365 = sbr.rel (%p363) target = $region64
        $region63: #{tpu_custom_call.1} parent=55 // pred_region
          %366 = dma.done [#allocation8], 3072
        $region64: #{tpu_custom_call.1} parent=55 // pred_fallthru
          _
        %s367 = sand.u32 %s40, 1
        %s368 = scalar_lea.sflag [#allocation5], %s367
        %s369 = sand.u32 %s40, 1
        %s370 = smul.addr %s369, 16
        %s371 = scalar_lea.vmem [#allocation4], %s370
        %p372 = pneg %p53
        %p373 = pneg %p50
        %p374 = pneg %p74
        %p375 = pneg %p71
        %p376 = pneg %p95
        %p377 = pneg %p92
        %p378 = pneg %p116
        %p379 = pneg %p113
        %p380 = pneg %p137
        %p381 = pneg %p134
        %p382 = pneg %p158
        %p383 = pneg %p155
        %p384 = pneg %p179
        %p385 = pneg %p176
        %p386 = pneg %p200
        %p387 = pneg %p197
        %p388 = pneg %p221
        %p389 = pneg %p218
        %p390 = pneg %p247
        %p391 = pneg %p244
        %s392 = sand.u32 %s234, 1
        %s393 = scalar_lea.sflag [#allocation6], %s392
        %s394 = sand.u32 %s234, 1
        %s395 = smul.addr %s394, 16
        %s396 = scalar_lea.vmem [#allocation9], %s395
        %p397 = pneg %p273
        %p398 = pneg %p270
        %s399 = sand.u32 %s260, 1
        %s400 = scalar_lea.sflag [#allocation11], %s399
        %s401 = sand.u32 %s260, 1
        %s402 = smul.addr %s401, 8
        %s403 = scalar_lea.vmem [#allocation10], %s402
        %vm404 = vcmask 516096
        %405 = vst.msk [vmem:[#allocation2] sm:$0x1] %vm404, 0.0
        %406 = vst.msk [vmem:[#allocation2 + $0x11] sm:$0x1] %vm404, 0.0
        %v407 = vld [vmem:[%s358] sm:$0xff]
        %v408 = vld [vmem:[%s358 + $0x8] sm:$0xff]
        %vm409 = vcmask 523264
        %410 = vst.msk [vmem:[#allocation2 + $0x1] sm:$0xff] %vm409, %v407
        %411 = vst.msk [vmem:[#allocation2 + $0x9] sm:$0xff] %vm409, %v408
        %v412 = vld [vmem:[#allocation2] sm:$0xff]
        %v413 = vld [vmem:[#allocation2 + $0x8] sm:$0xff]
        %v414 = vld [vmem:[#allocation7] sm:$0xff]
        %v415 = vld [vmem:[#allocation7 + $0x8] sm:$0xff]
        %v416 = vld [vmem:[#allocation7 + $0x10] sm:$0xff]
        %v417 = vld [vmem:[#allocation7 + $0x18] sm:$0xff]
        %v418 = vld [vmem:[#allocation7 + $0x20] sm:$0xff]
        %v419 = vld [vmem:[#allocation7 + $0x28] sm:$0xff]
        %v420 = vld [vmem:[#allocation7 + $0x30] sm:$0xff]
        %v421 = vld [vmem:[#allocation7 + $0x38] sm:$0xff]
        %v422 = vld [vmem:[#allocation2 + $0x1] sm:$0xff]
        %v423 = vld [vmem:[#allocation2 + $0x9] sm:$0xff]
        %s424 = scalar_lea.vmem [#allocation7], 64
        %v425 = vld [vmem:[%s424] sm:$0xff]
        %v426 = vld [vmem:[%s424 + $0x8] sm:$0xff]
        %v427 = vld [vmem:[%s424 + $0x10] sm:$0xff]
        %v428 = vld [vmem:[%s424 + $0x18] sm:$0xff]
        %v429 = vld [vmem:[%s424 + $0x20] sm:$0xff]
        %v430 = vld [vmem:[%s424 + $0x28] sm:$0xff]
        %v431 = vld [vmem:[%s424 + $0x30] sm:$0xff]
        %v432 = vld [vmem:[%s424 + $0x38] sm:$0xff]
        %v434 = vsel %vm409, %v422, 0
        %v437 = vsel %vm409, %v423, 0
        %439 = vmatprep.subr.mxu0 0.0
        %440 = vmatpush1.msra.mxu0 %v425
        %441 = vmatprep.subr.mxu0 0.0
        %442 = vmatpush1.msra.mxu0 %v426
        %443 = vmatprep.subr.mxu0 0.0
        %444 = vmatpush1.msra.mxu0 %v427
        %445 = vmatprep.subr.mxu0 0.0
        %446 = vmatpush1.msra.mxu0 %v428
        %447 = vmatprep.subr.mxu0 0.0
        %448 = vmatpush1.msra.mxu0 %v429
        %449 = vmatprep.subr.mxu0 0.0
        %450 = vmatpush1.msra.mxu0 %v430
        %451 = vmatprep.subr.mxu0 0.0
        %452 = vmatpush1.msra.mxu0 %v431
        %453 = vmatprep.subr.mxu0 0.0
        %454 = vmatpush1.msra.mxu0 %v432
        %455 = vmatprep.subr.mxu0 0.0
        %456 = vmatpush1.msra.mxu0 0.0
        %457 = vmatprep.subr.mxu0 0.0
        %458 = vmatpush1.msra.mxu0 0.0
        %459 = vmatprep.subr.mxu0 0.0
        %460 = vmatpush1.msra.mxu0 0.0
        %461 = vmatprep.subr.mxu0 0.0
        %462 = vmatpush1.msra.mxu0 0.0
        %463 = vmatprep.subr.mxu0 0.0
        %464 = vmatpush1.msra.mxu0 0.0
        %465 = vmatprep.subr.mxu0 0.0
        %466 = vmatpush1.msra.mxu0 0.0
        %467 = vmatprep.subr.mxu0 0.0
        %468 = vmatpush1.msra.mxu0 0.0
        %469 = vmatprep.subr.mxu0 0.0
        %470 = vmatpush1.msra.mxu0 0.0
        %471 = vmatprep.subr.mxu0 0.0
        %472 = vmatpush1.msra.mxu0 0.0
        %473 = vmatprep.subr.mxu0 0.0
        %474 = vmatpush1.msra.mxu0 0.0
        %475 = vmatprep.subr.mxu0 0.0
        %476 = vmatpush1.msra.mxu0 0.0
        %477 = vmatprep.subr.mxu0 0.0
        %478 = vmatpush1.msra.mxu0 0.0
        %479 = vmatprep.subr.mxu0 0.0
        %480 = vmatpush1.msra.mxu0 0.0
        %481 = vmatprep.subr.mxu0 0.0
        %482 = vmatpush1.msra.mxu0 0.0
        %483 = vmatprep.subr.mxu0 0.0
        %484 = vmatpush1.msra.mxu0 0.0
        %485 = vmatprep.subr.mxu0 0.0
        %486 = vmatpush1.msra.mxu0 0.0
        %487 = vmatprep.subr.mxu0 0.0
        %488 = vmatpush1.msra.mxu0 0.0
        %489 = vmatprep.subr.mxu0 0.0
        %490 = vmatpush1.msra.mxu0 0.0
        %491 = vmatprep.subr.mxu0 0.0
        %492 = vmatpush1.msra.mxu0 0.0
        %493 = vmatprep.subr.mxu0 0.0
        %494 = vmatpush1.msra.mxu0 0.0
        %495 = vmatprep.subr.mxu0 0.0
        %496 = vmatpush1.msra.mxu0 0.0
        %497 = vmatprep.subr.mxu0 0.0
        %498 = vmatpush1.msra.mxu0 0.0
        %499 = vmatprep.subr.mxu0 0.0
        %500 = vmatpush1.msra.mxu0 0.0
        %501 = vmatprep.subr.mxu0 0.0
        %502 = vmatpush1.msra.mxu0 0.0
        %503 = vmatprep.mubr.f32.mxu0 0.0
        %504 = vmatmul.mubr.f32.gmra.mrb[0].mxu0 %v434
        %v505 = vpop.f32.mrb[0].mxu0
        %v506 = vadd.f32 0.0, %v505
        %v507 = vpop.f32.mrb[0].mxu0
        %508 = vmatprep.mubr.f32.mxu0 0.0
        %509 = vmatmul.mubr.f32.gmra.mrb[0].mxu0 %v437
        %v510 = vpop.f32.mrb[0].mxu0
        %v511 = vadd.f32 0.0, %v510
        %v512 = vpop.f32.mrb[0].mxu0
        %513 = vdwg.mxu0
        %v515 = vsel %vm409, %v412, 0
        %v518 = vsel %vm409, %v413, 0
        %520 = vmatprep.subr.mxu0 0.0
        %521 = vmatpush1.msra.mxu0 %v414
        %522 = vmatprep.subr.mxu0 0.0
        %523 = vmatpush1.msra.mxu0 %v415
        %524 = vmatprep.subr.mxu0 0.0
        %525 = vmatpush1.msra.mxu0 %v416
        %526 = vmatprep.subr.mxu0 0.0
        %527 = vmatpush1.msra.mxu0 %v417
        %528 = vmatprep.subr.mxu0 0.0
        %529 = vmatpush1.msra.mxu0 %v418
        %530 = vmatprep.subr.mxu0 0.0
        %531 = vmatpush1.msra.mxu0 %v419
        %532 = vmatprep.subr.mxu0 0.0
        %533 = vmatpush1.msra.mxu0 %v420
        %534 = vmatprep.subr.mxu0 0.0
        %535 = vmatpush1.msra.mxu0 %v421
        %536 = vmatprep.subr.mxu0 0.0
        %537 = vmatpush1.msra.mxu0 0.0
        %538 = vmatprep.subr.mxu0 0.0
        %539 = vmatpush1.msra.mxu0 0.0
        %540 = vmatprep.subr.mxu0 0.0
        %541 = vmatpush1.msra.mxu0 0.0
        %542 = vmatprep.subr.mxu0 0.0
        %543 = vmatpush1.msra.mxu0 0.0
        %544 = vmatprep.subr.mxu0 0.0
        %545 = vmatpush1.msra.mxu0 0.0
        %546 = vmatprep.subr.mxu0 0.0
        %547 = vmatpush1.msra.mxu0 0.0
        %548 = vmatprep.subr.mxu0 0.0
        %549 = vmatpush1.msra.mxu0 0.0
        %550 = vmatprep.subr.mxu0 0.0
        %551 = vmatpush1.msra.mxu0 0.0
        %552 = vmatprep.subr.mxu0 0.0
        %553 = vmatpush1.msra.mxu0 0.0
        %554 = vmatprep.subr.mxu0 0.0
        %555 = vmatpush1.msra.mxu0 0.0
        %556 = vmatprep.subr.mxu0 0.0
        %557 = vmatpush1.msra.mxu0 0.0
        %558 = vmatprep.subr.mxu0 0.0
        %559 = vmatpush1.msra.mxu0 0.0
        %560 = vmatprep.subr.mxu0 0.0
        %561 = vmatpush1.msra.mxu0 0.0
        %562 = vmatprep.subr.mxu0 0.0
        %563 = vmatpush1.msra.mxu0 0.0
        %564 = vmatprep.subr.mxu0 0.0
        %565 = vmatpush1.msra.mxu0 0.0
        %566 = vmatprep.subr.mxu0 0.0
        %567 = vmatpush1.msra.mxu0 0.0
        %568 = vmatprep.subr.mxu0 0.0
        %569 = vmatpush1.msra.mxu0 0.0
        %570 = vmatprep.subr.mxu0 0.0
        %571 = vmatpush1.msra.mxu0 0.0
        %572 = vmatprep.subr.mxu0 0.0
        %573 = vmatpush1.msra.mxu0 0.0
        %574 = vmatprep.subr.mxu0 0.0
        %575 = vmatpush1.msra.mxu0 0.0
        %576 = vmatprep.subr.mxu0 0.0
        %577 = vmatpush1.msra.mxu0 0.0
        %578 = vmatprep.subr.mxu0 0.0
        %579 = vmatpush1.msra.mxu0 0.0
        %580 = vmatprep.subr.mxu0 0.0
        %581 = vmatpush1.msra.mxu0 0.0
        %582 = vmatprep.subr.mxu0 0.0
        %583 = vmatpush1.msra.mxu0 0.0
        %584 = vmatprep.mubr.f32.mxu0 0.0
        %585 = vmatmul.mubr.f32.gmra.mrb[0].mxu0 %v515
        %v586 = vpop.f32.mrb[0].mxu0
        %v587 = vadd.f32 %v506, %v586
        %v588 = vpop.f32.mrb[0].mxu0
        %589 = vmatprep.mubr.f32.mxu0 0.0
        %590 = vmatmul.mubr.f32.gmra.mrb[0].mxu0 %v518
        %v591 = vpop.f32.mrb[0].mxu0
        %v592 = vadd.f32 %v511, %v591
        %v593 = vpop.f32.mrb[0].mxu0
        %594 = vdwg.mxu0
        %v595 = vld [vmem:[#allocation2 + $0x2] sm:$0xff]
        %v596 = vld [vmem:[#allocation2 + $0xa] sm:$0xff]
        %s597 = scalar_lea.vmem [#allocation7], 128
        %v598 = vld [vmem:[%s597] sm:$0xff]
        %v599 = vld [vmem:[%s597 + $0x8] sm:$0xff]
        %v600 = vld [vmem:[%s597 + $0x10] sm:$0xff]
        %v601 = vld [vmem:[%s597 + $0x18] sm:$0xff]
        %v602 = vld [vmem:[%s597 + $0x20] sm:$0xff]
        %v603 = vld [vmem:[%s597 + $0x28] sm:$0xff]
        %v604 = vld [vmem:[%s597 + $0x30] sm:$0xff]
        %v605 = vld [vmem:[%s597 + $0x38] sm:$0xff]
        %v607 = vsel %vm409, %v595, 0
        %v610 = vsel %vm409, %v596, 0
        %612 = vmatprep.subr.mxu0 0.0
        %613 = vmatpush1.msra.mxu0 %v598
        %614 = vmatprep.subr.mxu0 0.0
        %615 = vmatpush1.msra.mxu0 %v599
        %616 = vmatprep.subr.mxu0 0.0
        %617 = vmatpush1.msra.mxu0 %v600
        %618 = vmatprep.subr.mxu0 0.0
        %619 = vmatpush1.msra.mxu0 %v601
        %620 = vmatprep.subr.mxu0 0.0
        %621 = vmatpush1.msra.mxu0 %v602
        %622 = vmatprep.subr.mxu0 0.0
        %623 = vmatpush1.msra.mxu0 %v603
        %624 = vmatprep.subr.mxu0 0.0
        %625 = vmatpush1.msra.mxu0 %v604
        %626 = vmatprep.subr.mxu0 0.0
        %627 = vmatpush1.msra.mxu0 %v605
        %628 = vmatprep.subr.mxu0 0.0
        %629 = vmatpush1.msra.mxu0 0.0
        %630 = vmatprep.subr.mxu0 0.0
        %631 = vmatpush1.msra.mxu0 0.0
        %632 = vmatprep.subr.mxu0 0.0
        %633 = vmatpush1.msra.mxu0 0.0
        %634 = vmatprep.subr.mxu0 0.0
        %635 = vmatpush1.msra.mxu0 0.0
        %636 = vmatprep.subr.mxu0 0.0
        %637 = vmatpush1.msra.mxu0 0.0
        %638 = vmatprep.subr.mxu0 0.0
        %639 = vmatpush1.msra.mxu0 0.0
        %640 = vmatprep.subr.mxu0 0.0
        %641 = vmatpush1.msra.mxu0 0.0
        %642 = vmatprep.subr.mxu0 0.0
        %643 = vmatpush1.msra.mxu0 0.0
        %644 = vmatprep.subr.mxu0 0.0
        %645 = vmatpush1.msra.mxu0 0.0
        %646 = vmatprep.subr.mxu0 0.0
        %647 = vmatpush1.msra.mxu0 0.0
        %648 = vmatprep.subr.mxu0 0.0
        %649 = vmatpush1.msra.mxu0 0.0
        %650 = vmatprep.subr.mxu0 0.0
        %651 = vmatpush1.msra.mxu0 0.0
        %652 = vmatprep.subr.mxu0 0.0
        %653 = vmatpush1.msra.mxu0 0.0
        %654 = vmatprep.subr.mxu0 0.0
        %655 = vmatpush1.msra.mxu0 0.0
        %656 = vmatprep.subr.mxu0 0.0
        %657 = vmatpush1.msra.mxu0 0.0
        %658 = vmatprep.subr.mxu0 0.0
        %659 = vmatpush1.msra.mxu0 0.0
        %660 = vmatprep.subr.mxu0 0.0
        %661 = vmatpush1.msra.mxu0 0.0
        %662 = vmatprep.subr.mxu0 0.0
        %663 = vmatpush1.msra.mxu0 0.0
        %664 = vmatprep.subr.mxu0 0.0
        %665 = vmatpush1.msra.mxu0 0.0
        %666 = vmatprep.subr.mxu0 0.0
        %667 = vmatpush1.msra.mxu0 0.0
        %668 = vmatprep.subr.mxu0 0.0
        %669 = vmatpush1.msra.mxu0 0.0
        %670 = vmatprep.subr.mxu0 0.0
        %671 = vmatpush1.msra.mxu0 0.0
        %672 = vmatprep.subr.mxu0 0.0
        %673 = vmatpush1.msra.mxu0 0.0
        %674 = vmatprep.subr.mxu0 0.0
        %675 = vmatpush1.msra.mxu0 0.0
        %676 = vmatprep.mubr.f32.mxu0 0.0
        %677 = vmatmul.mubr.f32.gmra.mrb[0].mxu0 %v607
        %v678 = vpop.f32.mrb[0].mxu0
        %v679 = vadd.f32 0.0, %v678
        %v680 = vpop.f32.mrb[0].mxu0
        %681 = vmatprep.mubr.f32.mxu0 0.0
        %682 = vmatmul.mubr.f32.gmra.mrb[0].mxu0 %v610
        %v683 = vpop.f32.mrb[0].mxu0
        %v684 = vadd.f32 0.0, %v683
        %v685 = vpop.f32.mrb[0].mxu0
        %686 = vdwg.mxu0
        %v687 = vadd.f32 %v587, %v679
        %v688 = vadd.f32 %v592, %v684
        %v689 = vld [vmem:[%s2] sm:$0x1]
        %v691 = vlaneseq
        %v692 = vshrl.u32 %v691, 7
        %v693 = vsub.s32 0, %v692
        %v694 = vrot.slane %v689, %v693
        %v696 = vmul.f32 %v687, %v694
        %v697 = vmul.f32 %v688, %v694
        %v698 = vld [vmem:[%s3] sm:$0x1]
        %v700 = vlaneseq
        %v701 = vshrl.u32 %v700, 7
        %v702 = vsub.s32 0, %v701
        %v703 = vrot.slane %v698, %v702
        %v705 = vadd.f32 %v696, %v703
        %v706 = vadd.f32 %v697, %v703
        %v707 = vmax.f32 %v705, 0.0
        %v708 = vmax.f32 %v706, 0.0
        %709 = vst [vmem:[#allocation3] sm:$0x1] 0.0
        %710 = vst [vmem:[#allocation3 + $0x11] sm:$0x1] 0.0
        %711 = vst [vmem:[#allocation3 + $0x1] sm:$0xff] %v707
        %712 = vst [vmem:[#allocation3 + $0x9] sm:$0xff] %v708
        %v713 = vld [vmem:[#allocation3] sm:$0xff]
        %v714 = vld [vmem:[#allocation3 + $0x8] sm:$0xff]
        %v715 = vld [vmem:[%s4] sm:$0xff]
        %v716 = vld [vmem:[%s4 + $0x8] sm:$0xff]
        %v717 = vld [vmem:[%s4 + $0x10] sm:$0xff]
        %v718 = vld [vmem:[%s4 + $0x18] sm:$0xff]
        %v719 = vld [vmem:[%s4 + $0x20] sm:$0xff]
        %v720 = vld [vmem:[%s4 + $0x28] sm:$0xff]
        %v721 = vld [vmem:[%s4 + $0x30] sm:$0xff]
        %v722 = vld [vmem:[%s4 + $0x38] sm:$0xff]
        %v723 = vld [vmem:[%s4 + $0x40] sm:$0xff]
        %v724 = vld [vmem:[%s4 + $0x48] sm:$0xff]
        %v725 = vld [vmem:[%s4 + $0x50] sm:$0xff]
        %v726 = vld [vmem:[%s4 + $0x58] sm:$0xff]
        %v727 = vld [vmem:[%s4 + $0x60] sm:$0xff]
        %v728 = vld [vmem:[%s4 + $0x68] sm:$0xff]
        %v729 = vld [vmem:[%s4 + $0x70] sm:$0xff]
        %v730 = vld [vmem:[%s4 + $0x78] sm:$0xff]
        %v731 = vld [vmem:[#allocation3 + $0x1] sm:$0xff]
        %v732 = vld [vmem:[#allocation3 + $0x9] sm:$0xff]
        %s733 = scalar_lea.vmem %s4, 128
        %v734 = vld [vmem:[%s733] sm:$0xff]
        %v735 = vld [vmem:[%s733 + $0x8] sm:$0xff]
        %v736 = vld [vmem:[%s733 + $0x10] sm:$0xff]
        %v737 = vld [vmem:[%s733 + $0x18] sm:$0xff]
        %v738 = vld [vmem:[%s733 + $0x20] sm:$0xff]
        %v739 = vld [vmem:[%s733 + $0x28] sm:$0xff]
        %v740 = vld [vmem:[%s733 + $0x30] sm:$0xff]
        %v741 = vld [vmem:[%s733 + $0x38] sm:$0xff]
        %v742 = vld [vmem:[%s733 + $0x40] sm:$0xff]
        %v743 = vld [vmem:[%s733 + $0x48] sm:$0xff]
        %v744 = vld [vmem:[%s733 + $0x50] sm:$0xff]
        %v745 = vld [vmem:[%s733 + $0x58] sm:$0xff]
        %v746 = vld [vmem:[%s733 + $0x60] sm:$0xff]
        %v747 = vld [vmem:[%s733 + $0x68] sm:$0xff]
        %v748 = vld [vmem:[%s733 + $0x70] sm:$0xff]
        %v749 = vld [vmem:[%s733 + $0x78] sm:$0xff]
        %750 = vmatprep.subr.mxu0 0.0
        %751 = vmatpush1.msra.mxu0 %v734
        %752 = vmatprep.subr.mxu0 0.0
        %753 = vmatpush1.msra.mxu0 %v735
        %754 = vmatprep.subr.mxu0 0.0
        %755 = vmatpush1.msra.mxu0 %v736
        %756 = vmatprep.subr.mxu0 0.0
        %757 = vmatpush1.msra.mxu0 %v737
        %758 = vmatprep.subr.mxu0 0.0
        %759 = vmatpush1.msra.mxu0 %v738
        %760 = vmatprep.subr.mxu0 0.0
        %761 = vmatpush1.msra.mxu0 %v739
        %762 = vmatprep.subr.mxu0 0.0
        %763 = vmatpush1.msra.mxu0 %v740
        %764 = vmatprep.subr.mxu0 0.0
        %765 = vmatpush1.msra.mxu0 %v741
        %766 = vmatprep.subr.mxu0 0.0
        %767 = vmatpush1.msra.mxu0 %v742
        %768 = vmatprep.subr.mxu0 0.0
        %769 = vmatpush1.msra.mxu0 %v743
        %770 = vmatprep.subr.mxu0 0.0
        %771 = vmatpush1.msra.mxu0 %v744
        %772 = vmatprep.subr.mxu0 0.0
        %773 = vmatpush1.msra.mxu0 %v745
        %774 = vmatprep.subr.mxu0 0.0
        %775 = vmatpush1.msra.mxu0 %v746
        %776 = vmatprep.subr.mxu0 0.0
        %777 = vmatpush1.msra.mxu0 %v747
        %778 = vmatprep.subr.mxu0 0.0
        %779 = vmatpush1.msra.mxu0 %v748
        %780 = vmatprep.subr.mxu0 0.0
        %781 = vmatpush1.msra.mxu0 %v749
        %782 = vmatprep.subr.mxu0 0.0
        %783 = vmatpush1.msra.mxu0 0.0
        %784 = vmatprep.subr.mxu0 0.0
        %785 = vmatpush1.msra.mxu0 0.0
        %786 = vmatprep.subr.mxu0 0.0
        %787 = vmatpush1.msra.mxu0 0.0
        %788 = vmatprep.subr.mxu0 0.0
        %789 = vmatpush1.msra.mxu0 0.0
        %790 = vmatprep.subr.mxu0 0.0
        %791 = vmatpush1.msra.mxu0 0.0
        %792 = vmatprep.subr.mxu0 0.0
        %793 = vmatpush1.msra.mxu0 0.0
        %794 = vmatprep.subr.mxu0 0.0
        %795 = vmatpush1.msra.mxu0 0.0
        %796 = vmatprep.subr.mxu0 0.0
        %797 = vmatpush1.msra.mxu0 0.0
        %798 = vmatprep.subr.mxu0 0.0
        %799 = vmatpush1.msra.mxu0 0.0
        %800 = vmatprep.subr.mxu0 0.0
        %801 = vmatpush1.msra.mxu0 0.0
        %802 = vmatprep.subr.mxu0 0.0
        %803 = vmatpush1.msra.mxu0 0.0
        %804 = vmatprep.subr.mxu0 0.0
        %805 = vmatpush1.msra.mxu0 0.0
        %806 = vmatprep.subr.mxu0 0.0
        %807 = vmatpush1.msra.mxu0 0.0
        %808 = vmatprep.subr.mxu0 0.0
        %809 = vmatpush1.msra.mxu0 0.0
        %810 = vmatprep.subr.mxu0 0.0
        %811 = vmatpush1.msra.mxu0 0.0
        %812 = vmatprep.subr.mxu0 0.0
        %813 = vmatpush1.msra.mxu0 0.0
        %814 = vmatprep.mubr.f32.mxu0 0.0
        %815 = vmatmul.mubr.f32.gmra.mrb[0].mxu0 %v731
        %v816 = vpop.f32.mrb[0].mxu0
        %v817 = vadd.f32 0.0, %v816
        %v818 = vpop.f32.mrb[0].mxu0
        %819 = vmatprep.mubr.f32.mxu0 0.0
        %820 = vmatmul.mubr.f32.gmra.mrb[0].mxu0 %v732
        %v821 = vpop.f32.mrb[0].mxu0
        %v822 = vadd.f32 0.0, %v821
        %v823 = vpop.f32.mrb[0].mxu0
        %824 = vdwg.mxu0
        %825 = vmatprep.subr.mxu0 0.0
        %826 = vmatpush1.msra.mxu0 %v715
        %827 = vmatprep.subr.mxu0 0.0
        %828 = vmatpush1.msra.mxu0 %v716
        %829 = vmatprep.subr.mxu0 0.0
        %830 = vmatpush1.msra.mxu0 %v717
        %831 = vmatprep.subr.mxu0 0.0
        %832 = vmatpush1.msra.mxu0 %v718
        %833 = vmatprep.subr.mxu0 0.0
        %834 = vmatpush1.msra.mxu0 %v719
        %835 = vmatprep.subr.mxu0 0.0
        %836 = vmatpush1.msra.mxu0 %v720
        %837 = vmatprep.subr.mxu0 0.0
        %838 = vmatpush1.msra.mxu0 %v721
        %839 = vmatprep.subr.mxu0 0.0
        %840 = vmatpush1.msra.mxu0 %v722
        %841 = vmatprep.subr.mxu0 0.0
        %842 = vmatpush1.msra.mxu0 %v723
        %843 = vmatprep.subr.mxu0 0.0
        %844 = vmatpush1.msra.mxu0 %v724
        %845 = vmatprep.subr.mxu0 0.0
        %846 = vmatpush1.msra.mxu0 %v725
        %847 = vmatprep.subr.mxu0 0.0
        %848 = vmatpush1.msra.mxu0 %v726
        %849 = vmatprep.subr.mxu0 0.0
        %850 = vmatpush1.msra.mxu0 %v727
        %851 = vmatprep.subr.mxu0 0.0
        %852 = vmatpush1.msra.mxu0 %v728
        %853 = vmatprep.subr.mxu0 0.0
        %854 = vmatpush1.msra.mxu0 %v729
        %855 = vmatprep.subr.mxu0 0.0
        %856 = vmatpush1.msra.mxu0 %v730
        %857 = vmatprep.subr.mxu0 0.0
        %858 = vmatpush1.msra.mxu0 0.0
        %859 = vmatprep.subr.mxu0 0.0
        %860 = vmatpush1.msra.mxu0 0.0
        %861 = vmatprep.subr.mxu0 0.0
        %862 = vmatpush1.msra.mxu0 0.0
        %863 = vmatprep.subr.mxu0 0.0
        %864 = vmatpush1.msra.mxu0 0.0
        %865 = vmatprep.subr.mxu0 0.0
        %866 = vmatpush1.msra.mxu0 0.0
        %867 = vmatprep.subr.mxu0 0.0
        %868 = vmatpush1.msra.mxu0 0.0
        %869 = vmatprep.subr.mxu0 0.0
        %870 = vmatpush1.msra.mxu0 0.0
        %871 = vmatprep.subr.mxu0 0.0
        %872 = vmatpush1.msra.mxu0 0.0
        %873 = vmatprep.subr.mxu0 0.0
        %874 = vmatpush1.msra.mxu0 0.0
        %875 = vmatprep.subr.mxu0 0.0
        %876 = vmatpush1.msra.mxu0 0.0
        %877 = vmatprep.subr.mxu0 0.0
        %878 = vmatpush1.msra.mxu0 0.0
        %879 = vmatprep.subr.mxu0 0.0
        %880 = vmatpush1.msra.mxu0 0.0
        %881 = vmatprep.subr.mxu0 0.0
        %882 = vmatpush1.msra.mxu0 0.0
        %883 = vmatprep.subr.mxu0 0.0
        %884 = vmatpush1.msra.mxu0 0.0
        %885 = vmatprep.subr.mxu0 0.0
        %886 = vmatpush1.msra.mxu0 0.0
        %887 = vmatprep.subr.mxu0 0.0
        %888 = vmatpush1.msra.mxu0 0.0
        %889 = vmatprep.mubr.f32.mxu0 0.0
        %890 = vmatmul.mubr.f32.gmra.mrb[0].mxu0 %v713
        %v891 = vpop.f32.mrb[0].mxu0
        %v892 = vadd.f32 %v817, %v891
        %v893 = vpop.f32.mrb[0].mxu0
        %894 = vmatprep.mubr.f32.mxu0 0.0
        %895 = vmatmul.mubr.f32.gmra.mrb[0].mxu0 %v714
        %v896 = vpop.f32.mrb[0].mxu0
        %v897 = vadd.f32 %v822, %v896
        %v898 = vpop.f32.mrb[0].mxu0
        %899 = vdwg.mxu0
        %v900 = vld [vmem:[#allocation3 + $0x2] sm:$0xff]
        %v901 = vld [vmem:[#allocation3 + $0xa] sm:$0xff]
        %s902 = scalar_lea.vmem %s4, 256
        %v903 = vld [vmem:[%s902] sm:$0xff]
        %v904 = vld [vmem:[%s902 + $0x8] sm:$0xff]
        %v905 = vld [vmem:[%s902 + $0x10] sm:$0xff]
        %v906 = vld [vmem:[%s902 + $0x18] sm:$0xff]
        %v907 = vld [vmem:[%s902 + $0x20] sm:$0xff]
        %v908 = vld [vmem:[%s902 + $0x28] sm:$0xff]
        %v909 = vld [vmem:[%s902 + $0x30] sm:$0xff]
        %v910 = vld [vmem:[%s902 + $0x38] sm:$0xff]
        %v911 = vld [vmem:[%s902 + $0x40] sm:$0xff]
        %v912 = vld [vmem:[%s902 + $0x48] sm:$0xff]
        %v913 = vld [vmem:[%s902 + $0x50] sm:$0xff]
        %v914 = vld [vmem:[%s902 + $0x58] sm:$0xff]
        %v915 = vld [vmem:[%s902 + $0x60] sm:$0xff]
        %v916 = vld [vmem:[%s902 + $0x68] sm:$0xff]
        %v917 = vld [vmem:[%s902 + $0x70] sm:$0xff]
        %v918 = vld [vmem:[%s902 + $0x78] sm:$0xff]
        %919 = vmatprep.subr.mxu0 0.0
        %920 = vmatpush1.msra.mxu0 %v903
        %921 = vmatprep.subr.mxu0 0.0
        %922 = vmatpush1.msra.mxu0 %v904
        %923 = vmatprep.subr.mxu0 0.0
        %924 = vmatpush1.msra.mxu0 %v905
        %925 = vmatprep.subr.mxu0 0.0
        %926 = vmatpush1.msra.mxu0 %v906
        %927 = vmatprep.subr.mxu0 0.0
        %928 = vmatpush1.msra.mxu0 %v907
        %929 = vmatprep.subr.mxu0 0.0
        %930 = vmatpush1.msra.mxu0 %v908
        %931 = vmatprep.subr.mxu0 0.0
        %932 = vmatpush1.msra.mxu0 %v909
        %933 = vmatprep.subr.mxu0 0.0
        %934 = vmatpush1.msra.mxu0 %v910
        %935 = vmatprep.subr.mxu0 0.0
        %936 = vmatpush1.msra.mxu0 %v911
        %937 = vmatprep.subr.mxu0 0.0
        %938 = vmatpush1.msra.mxu0 %v912
        %939 = vmatprep.subr.mxu0 0.0
        %940 = vmatpush1.msra.mxu0 %v913
        %941 = vmatprep.subr.mxu0 0.0
        %942 = vmatpush1.msra.mxu0 %v914
        %943 = vmatprep.subr.mxu0 0.0
        %944 = vmatpush1.msra.mxu0 %v915
        %945 = vmatprep.subr.mxu0 0.0
        %946 = vmatpush1.msra.mxu0 %v916
        %947 = vmatprep.subr.mxu0 0.0
        %948 = vmatpush1.msra.mxu0 %v917
        %949 = vmatprep.subr.mxu0 0.0
        %950 = vmatpush1.msra.mxu0 %v918
        %951 = vmatprep.subr.mxu0 0.0
        %952 = vmatpush1.msra.mxu0 0.0
        %953 = vmatprep.subr.mxu0 0.0
        %954 = vmatpush1.msra.mxu0 0.0
        %955 = vmatprep.subr.mxu0 0.0
        %956 = vmatpush1.msra.mxu0 0.0
        %957 = vmatprep.subr.mxu0 0.0
        %958 = vmatpush1.msra.mxu0 0.0
        %959 = vmatprep.subr.mxu0 0.0
        %960 = vmatpush1.msra.mxu0 0.0
        %961 = vmatprep.subr.mxu0 0.0
        %962 = vmatpush1.msra.mxu0 0.0
        %963 = vmatprep.subr.mxu0 0.0
        %964 = vmatpush1.msra.mxu0 0.0
        %965 = vmatprep.subr.mxu0 0.0
        %966 = vmatpush1.msra.mxu0 0.0
        %967 = vmatprep.subr.mxu0 0.0
        %968 = vmatpush1.msra.mxu0 0.0
        %969 = vmatprep.subr.mxu0 0.0
        %970 = vmatpush1.msra.mxu0 0.0
        %971 = vmatprep.subr.mxu0 0.0
        %972 = vmatpush1.msra.mxu0 0.0
        %973 = vmatprep.subr.mxu0 0.0
        %974 = vmatpush1.msra.mxu0 0.0
        %975 = vmatprep.subr.mxu0 0.0
        %976 = vmatpush1.msra.mxu0 0.0
        %977 = vmatprep.subr.mxu0 0.0
        %978 = vmatpush1.msra.mxu0 0.0
        %979 = vmatprep.subr.mxu0 0.0
        %980 = vmatpush1.msra.mxu0 0.0
        %981 = vmatprep.subr.mxu0 0.0
        %982 = vmatpush1.msra.mxu0 0.0
        %983 = vmatprep.mubr.f32.mxu0 0.0
        %984 = vmatmul.mubr.f32.gmra.mrb[0].mxu0 %v900
        %v985 = vpop.f32.mrb[0].mxu0
        %v986 = vadd.f32 0.0, %v985
        %v987 = vpop.f32.mrb[0].mxu0
        %988 = vmatprep.mubr.f32.mxu0 0.0
        %989 = vmatmul.mubr.f32.gmra.mrb[0].mxu0 %v901
        %v990 = vpop.f32.mrb[0].mxu0
        %v991 = vadd.f32 0.0, %v990
        %v992 = vpop.f32.mrb[0].mxu0
        %993 = vdwg.mxu0
        %v994 = vadd.f32 %v892, %v986
        %v995 = vadd.f32 %v897, %v991
        %v996 = vld [vmem:[%s5] sm:$0x1]
        %v998 = vlaneseq
        %v999 = vshrl.u32 %v998, 7
        %v1000 = vsub.s32 0, %v999
        %v1001 = vrot.slane %v996, %v1000
        %v1003 = vmul.f32 %v994, %v1001
        %v1004 = vmul.f32 %v995, %v1001
        %v1005 = vld [vmem:[%s6] sm:$0x1]
        %v1007 = vlaneseq
        %v1008 = vshrl.u32 %v1007, 7
        %v1009 = vsub.s32 0, %v1008
        %v1010 = vrot.slane %v1005, %v1009
        %v1012 = vadd.f32 %v1003, %v1010
        %v1013 = vadd.f32 %v1004, %v1010
        %v1014 = vmax.f32 %v1012, 0.0
        %v1015 = vmax.f32 %v1013, 0.0
        %1016 = vst [vmem:[%s396] sm:$0xff] %v1014
        %1017 = vst [vmem:[%s396 + $0x8] sm:$0xff] %v1015
        %v1020 = vcombine.high %v1014, %v1014
        %v1022 = vunpack.c.l.s4 1983009808
        %v1023 = vunpack.c.0.s8 %v1022
        %v1024 = vlaneseq
        %v1025 = vshrl.u32 %v1024, 7
        %v1026 = vsub.s32 %v1023, %v1025
        %v1027 = vrot.slane %v1014, %v1026
        %v1029 = vunpack.c.l.s4 1983009808
        %v1030 = vunpack.c.0.s8 %v1029
        %v1031 = vlaneseq
        %v1032 = vshrl.u32 %v1031, 7
        %v1033 = vsub.s32 %v1030, %v1032
        %v1034 = vrot.slane %v1020, %v1033
        %v1035 = vcombine.high %v1027, %v1027
        %v1036 = vcombine.high %v1034, %v1034
        %v1037 = vcombine.high %v1015, %v1015
        %v1039 = vunpack.c.l.s4 1983009808
        %v1040 = vunpack.c.0.s8 %v1039
        %v1041 = vlaneseq
        %v1042 = vshrl.u32 %v1041, 7
        %v1043 = vsub.s32 %v1040, %v1042
        %v1044 = vrot.slane %v1015, %v1043
        %v1046 = vunpack.c.l.s4 1983009808
        %v1047 = vunpack.c.0.s8 %v1046
        %v1048 = vlaneseq
        %v1049 = vshrl.u32 %v1048, 7
        %v1050 = vsub.s32 %v1047, %v1049
        %v1051 = vrot.slane %v1037, %v1050
        %v1052 = vcombine.high %v1044, %v1044
        %v1053 = vcombine.high %v1051, %v1051
        %v1062 = vrot.slane %v1027, 7
        %v1063 = vrot.slane %v1062, 2
        %v1064 = vrot.slane %v1035, 7
        %v1065 = vrot.slane %v1064, 2
        %v1066 = vrot.slane %v1034, 7
        %v1067 = vrot.slane %v1066, 2
        %v1068 = vrot.slane %v1036, 7
        %v1069 = vrot.slane %v1068, 2
        %v1070 = vrot.slane %v1044, 7
        %v1071 = vrot.slane %v1070, 2
        %v1072 = vrot.slane %v1052, 7
        %v1073 = vrot.slane %v1072, 2
        %v1074 = vrot.slane %v1051, 7
        %v1075 = vrot.slane %v1074, 2
        %v1076 = vrot.slane %v1053, 7
        %v1077 = vrot.slane %v1076, 2
        %v1086 = vmax.f32 %v1027, %v1063
        %v1087 = vmax.f32 %v1035, %v1065
        %v1088 = vmax.f32 %v1034, %v1067
        %v1089 = vmax.f32 %v1036, %v1069
        %v1090 = vmax.f32 %v1044, %v1071
        %v1091 = vmax.f32 %v1052, %v1073
        %v1092 = vmax.f32 %v1051, %v1075
        %v1093 = vmax.f32 %v1053, %v1077
        %v1094 = vld [vmem:[%s7] sm:$0xff]
        %v1095 = vld [vmem:[%s7 + $0x8] sm:$0xff]
        %v1096 = vld [vmem:[%s7 + $0x10] sm:$0xff]
        %v1097 = vld [vmem:[%s7 + $0x18] sm:$0xff]
        %v1098 = vld [vmem:[%s7 + $0x20] sm:$0xff]
        %v1099 = vld [vmem:[%s7 + $0x28] sm:$0xff]
        %v1100 = vld [vmem:[%s7 + $0x30] sm:$0xff]
        %v1101 = vld [vmem:[%s7 + $0x38] sm:$0xff]
        %v1102 = vld [vmem:[%s7 + $0x40] sm:$0xff]
        %v1103 = vld [vmem:[%s7 + $0x48] sm:$0xff]
        %v1104 = vld [vmem:[%s7 + $0x50] sm:$0xff]
        %v1105 = vld [vmem:[%s7 + $0x58] sm:$0xff]
        %v1106 = vld [vmem:[%s7 + $0x60] sm:$0xff]
        %v1107 = vld [vmem:[%s7 + $0x68] sm:$0xff]
        %v1108 = vld [vmem:[%s7 + $0x70] sm:$0xff]
        %v1109 = vld [vmem:[%s7 + $0x78] sm:$0xff]
        %v1118 = vlaneseq
        %v1119 = vshrl.u32 %v1118, 7
        %v1120 = vsub.s32 0, %v1119
        %v1121 = vrot.slane %v1086, %v1120
        %v1122 = vlaneseq
        %v1123 = vshrl.u32 %v1122, 7
        %v1124 = vsub.s32 0, %v1123
        %v1125 = vrot.slane %v1087, %v1124
        %v1126 = vlaneseq
        %v1127 = vshrl.u32 %v1126, 7
        %v1128 = vsub.s32 0, %v1127
        %v1129 = vrot.slane %v1088, %v1128
        %v1130 = vlaneseq
        %v1131 = vshrl.u32 %v1130, 7
        %v1132 = vsub.s32 0, %v1131
        %v1133 = vrot.slane %v1089, %v1132
        %v1134 = vlaneseq
        %v1135 = vshrl.u32 %v1134, 7
        %v1136 = vsub.s32 0, %v1135
        %v1137 = vrot.slane %v1090, %v1136
        %v1138 = vlaneseq
        %v1139 = vshrl.u32 %v1138, 7
        %v1140 = vsub.s32 0, %v1139
        %v1141 = vrot.slane %v1091, %v1140
        %v1142 = vlaneseq
        %v1143 = vshrl.u32 %v1142, 7
        %v1144 = vsub.s32 0, %v1143
        %v1145 = vrot.slane %v1092, %v1144
        %v1146 = vlaneseq
        %v1147 = vshrl.u32 %v1146, 7
        %v1148 = vsub.s32 0, %v1147
        %v1149 = vrot.slane %v1093, %v1148
        %vm1150 = vcmask 1041409
        %v1151 = vsel %vm1150, %v1125, %v1121
        %vm1152 = vcmask 1042434
        %v1153 = vsel %vm1152, %v1129, %v1151
        %vm1154 = vcmask 1043459
        %v1155 = vsel %vm1154, %v1133, %v1153
        %vm1156 = vcmask 1044484
        %v1157 = vsel %vm1156, %v1137, %v1155
        %vm1158 = vcmask 1045509
        %v1159 = vsel %vm1158, %v1141, %v1157
        %vm1160 = vcmask 1046534
        %v1161 = vsel %vm1160, %v1145, %v1159
        %vm1162 = vcmask 1047559
        %v1163 = vsel %vm1162, %v1149, %v1161
        %1165 = vmatprep.subr.mxu0 0.0
        %1166 = vmatpush1.msra.mxu0 %v1094
        %1167 = vmatprep.subr.mxu0 0.0
        %1168 = vmatpush1.msra.mxu0 %v1095
        %1169 = vmatprep.subr.mxu0 0.0
        %1170 = vmatpush1.msra.mxu0 %v1096
        %1171 = vmatprep.subr.mxu0 0.0
        %1172 = vmatpush1.msra.mxu0 %v1097
        %1173 = vmatprep.subr.mxu0 0.0
        %1174 = vmatpush1.msra.mxu0 %v1098
        %1175 = vmatprep.subr.mxu0 0.0
        %1176 = vmatpush1.msra.mxu0 %v1099
        %1177 = vmatprep.subr.mxu0 0.0
        %1178 = vmatpush1.msra.mxu0 %v1100
        %1179 = vmatprep.subr.mxu0 0.0
        %1180 = vmatpush1.msra.mxu0 %v1101
        %1181 = vmatprep.subr.mxu0 0.0
        %1182 = vmatpush1.msra.mxu0 %v1102
        %1183 = vmatprep.subr.mxu0 0.0
        %1184 = vmatpush1.msra.mxu0 %v1103
        %1185 = vmatprep.subr.mxu0 0.0
        %1186 = vmatpush1.msra.mxu0 %v1104
        %1187 = vmatprep.subr.mxu0 0.0
        %1188 = vmatpush1.msra.mxu0 %v1105
        %1189 = vmatprep.subr.mxu0 0.0
        %1190 = vmatpush1.msra.mxu0 %v1106
        %1191 = vmatprep.subr.mxu0 0.0
        %1192 = vmatpush1.msra.mxu0 %v1107
        %1193 = vmatprep.subr.mxu0 0.0
        %1194 = vmatpush1.msra.mxu0 %v1108
        %1195 = vmatprep.subr.mxu0 0.0
        %1196 = vmatpush1.msra.mxu0 %v1109
        %1197 = vmatprep.subr.mxu0 0.0
        %1198 = vmatpush1.msra.mxu0 0.0
        %1199 = vmatprep.subr.mxu0 0.0
        %1200 = vmatpush1.msra.mxu0 0.0
        %1201 = vmatprep.subr.mxu0 0.0
        %1202 = vmatpush1.msra.mxu0 0.0
        %1203 = vmatprep.subr.mxu0 0.0
        %1204 = vmatpush1.msra.mxu0 0.0
        %1205 = vmatprep.subr.mxu0 0.0
        %1206 = vmatpush1.msra.mxu0 0.0
        %1207 = vmatprep.subr.mxu0 0.0
        %1208 = vmatpush1.msra.mxu0 0.0
        %1209 = vmatprep.subr.mxu0 0.0
        %1210 = vmatpush1.msra.mxu0 0.0
        %1211 = vmatprep.subr.mxu0 0.0
        %1212 = vmatpush1.msra.mxu0 0.0
        %1213 = vmatprep.subr.mxu0 0.0
        %1214 = vmatpush1.msra.mxu0 0.0
        %1215 = vmatprep.subr.mxu0 0.0
        %1216 = vmatpush1.msra.mxu0 0.0
        %1217 = vmatprep.subr.mxu0 0.0
        %1218 = vmatpush1.msra.mxu0 0.0
        %1219 = vmatprep.subr.mxu0 0.0
        %1220 = vmatpush1.msra.mxu0 0.0
        %1221 = vmatprep.subr.mxu0 0.0
        %1222 = vmatpush1.msra.mxu0 0.0
        %1223 = vmatprep.subr.mxu0 0.0
        %1224 = vmatpush1.msra.mxu0 0.0
        %1225 = vmatprep.subr.mxu0 0.0
        %1226 = vmatpush1.msra.mxu0 0.0
        %1227 = vmatprep.subr.mxu0 0.0
        %1228 = vmatpush1.msra.mxu0 0.0
        %1229 = vmatprep.mubr.f32.mxu0 0.0
        %1230 = vmatmul.mubr.f32.gmra.mrb[0].mxu0 %v1163
        %v1231 = vpop.f32.mrb[0].mxu0
        %v1232 = vadd.f32 0.0, %v1231
        %v1233 = vpop.f32.mrb[0].mxu0
        %1234 = vdwg.mxu0
        %v1235 = vld [vmem:[%s8] sm:$0xff]
        %v1236 = vld [vmem:[%s8 + $0x8] sm:$0xff]
        %v1237 = vld [vmem:[%s8 + $0x10] sm:$0xff]
        %v1238 = vld [vmem:[%s8 + $0x18] sm:$0xff]
        %v1239 = vld [vmem:[%s8 + $0x20] sm:$0xff]
        %v1240 = vld [vmem:[%s8 + $0x28] sm:$0xff]
        %v1241 = vld [vmem:[%s8 + $0x30] sm:$0xff]
        %v1242 = vld [vmem:[%s8 + $0x38] sm:$0xff]
        %v1243 = vld [vmem:[%s8 + $0x40] sm:$0xff]
        %v1244 = vld [vmem:[%s8 + $0x48] sm:$0xff]
        %v1245 = vld [vmem:[%s8 + $0x50] sm:$0xff]
        %v1246 = vld [vmem:[%s8 + $0x58] sm:$0xff]
        %v1247 = vld [vmem:[%s8 + $0x60] sm:$0xff]
        %v1248 = vld [vmem:[%s8 + $0x68] sm:$0xff]
        %v1249 = vld [vmem:[%s8 + $0x70] sm:$0xff]
        %v1250 = vld [vmem:[%s8 + $0x78] sm:$0xff]
        %1251 = vmatprep.subr.mxu0 0.0
        %1252 = vmatpush1.msra.mxu0 %v1235
        %1253 = vmatprep.subr.mxu0 0.0
        %1254 = vmatpush1.msra.mxu0 %v1236
        %1255 = vmatprep.subr.mxu0 0.0
        %1256 = vmatpush1.msra.mxu0 %v1237
        %1257 = vmatprep.subr.mxu0 0.0
        %1258 = vmatpush1.msra.mxu0 %v1238
        %1259 = vmatprep.subr.mxu0 0.0
        %1260 = vmatpush1.msra.mxu0 %v1239
        %1261 = vmatprep.subr.mxu0 0.0
        %1262 = vmatpush1.msra.mxu0 %v1240
        %1263 = vmatprep.subr.mxu0 0.0
        %1264 = vmatpush1.msra.mxu0 %v1241
        %1265 = vmatprep.subr.mxu0 0.0
        %1266 = vmatpush1.msra.mxu0 %v1242
        %1267 = vmatprep.subr.mxu0 0.0
        %1268 = vmatpush1.msra.mxu0 %v1243
        %1269 = vmatprep.subr.mxu0 0.0
        %1270 = vmatpush1.msra.mxu0 %v1244
        %1271 = vmatprep.subr.mxu0 0.0
        %1272 = vmatpush1.msra.mxu0 %v1245
        %1273 = vmatprep.subr.mxu0 0.0
        %1274 = vmatpush1.msra.mxu0 %v1246
        %1275 = vmatprep.subr.mxu0 0.0
        %1276 = vmatpush1.msra.mxu0 %v1247
        %1277 = vmatprep.subr.mxu0 0.0
        %1278 = vmatpush1.msra.mxu0 %v1248
        %1279 = vmatprep.subr.mxu0 0.0
        %1280 = vmatpush1.msra.mxu0 %v1249
        %1281 = vmatprep.subr.mxu0 0.0
        %1282 = vmatpush1.msra.mxu0 %v1250
        %1283 = vmatprep.subr.mxu0 0.0
        %1284 = vmatpush1.msra.mxu0 0.0
        %1285 = vmatprep.subr.mxu0 0.0
        %1286 = vmatpush1.msra.mxu0 0.0
        %1287 = vmatprep.subr.mxu0 0.0
        %1288 = vmatpush1.msra.mxu0 0.0
        %1289 = vmatprep.subr.mxu0 0.0
        %1290 = vmatpush1.msra.mxu0 0.0
        %1291 = vmatprep.subr.mxu0 0.0
        %1292 = vmatpush1.msra.mxu0 0.0
        %1293 = vmatprep.subr.mxu0 0.0
        %1294 = vmatpush1.msra.mxu0 0.0
        %1295 = vmatprep.subr.mxu0 0.0
        %1296 = vmatpush1.msra.mxu0 0.0
        %1297 = vmatprep.subr.mxu0 0.0
        %1298 = vmatpush1.msra.mxu0 0.0
        %1299 = vmatprep.subr.mxu0 0.0
        %1300 = vmatpush1.msra.mxu0 0.0
        %1301 = vmatprep.subr.mxu0 0.0
        %1302 = vmatpush1.msra.mxu0 0.0
        %1303 = vmatprep.subr.mxu0 0.0
        %1304 = vmatpush1.msra.mxu0 0.0
        %1305 = vmatprep.subr.mxu0 0.0
        %1306 = vmatpush1.msra.mxu0 0.0
        %1307 = vmatprep.subr.mxu0 0.0
        %1308 = vmatpush1.msra.mxu0 0.0
        %1309 = vmatprep.subr.mxu0 0.0
        %1310 = vmatpush1.msra.mxu0 0.0
        %1311 = vmatprep.subr.mxu0 0.0
        %1312 = vmatpush1.msra.mxu0 0.0
        %1313 = vmatprep.subr.mxu0 0.0
        %1314 = vmatpush1.msra.mxu0 0.0
        %1315 = vmatprep.mubr.f32.mxu0 0.0
        %1316 = vmatmul.mubr.f32.gmra.mrb[0].mxu0 %v1163
        %v1317 = vpop.f32.mrb[0].mxu0
        %v1318 = vadd.f32 0.0, %v1317
        %v1319 = vpop.f32.mrb[0].mxu0
        %1320 = vdwg.mxu0
        %v1321 = vmax.f32 %v1232, %v1318
        %1322 = vst.msk [vmem:[%s403] sm:$0xff] %vm409, %v1321
        %s1323 = sand.u32 %s234, 1
        %s1324 = scalar_lea.sflag [#allocation6], %s1323
        %s1325 = sand.u32 %s234, 1
        %s1326 = smul.addr %s1325, 16
        %s1327 = scalar_lea.vmem [#allocation9], %s1326
        %s1328 = sand.u32 %s260, 1
        %s1329 = scalar_lea.sflag [#allocation11], %s1328
        %s1330 = sand.u32 %s260, 1
        %s1331 = smul.addr %s1330, 8
        %s1332 = scalar_lea.vmem [#allocation10], %s1331
        // Predicated region
        $region65: #{tpu_custom_call.1} parent=55 // pred_check
          %p1333 = pneg %p244
        $region66: #{tpu_custom_call.1} parent=55 // pred_check_branch
          %1335 = sbr.rel (%p1333) target = $region68
        $region67: #{tpu_custom_call.1} parent=55 // pred_region
          %s1337 = ssub.s32 256, 256
          %1338 = vsyncadd %s1324, %s1337
          %s1339 = smul.addr %s32, 2
          %s1340 = smul.addr %s1339, 128
          %s1341 = scalar_lea.hbm %s9, %s1340
          %s1342 = sshll.u32 %s1327, 4
          %s1343 = int_to_ptr.vmem [resolvable:$true] %s1342
          %1348 = dma.vmem_to_hbm [thread:$0]  %s1343, 256, %s1341, %s1324, 128, 128, 8
        $region68: #{tpu_custom_call.1} parent=55 // pred_fallthru
          _
        // Predicated region
        $region69: #{tpu_custom_call.1} parent=55 // pred_check
          %p1349 = pneg %p270
        $region70: #{tpu_custom_call.1} parent=55 // pred_check_branch
          %1351 = sbr.rel (%p1349) target = $region72
        $region71: #{tpu_custom_call.1} parent=55 // pred_region
          %s1353 = ssub.s32 128, 128
          %1354 = vsyncadd %s1329, %s1353
          %s1355 = smul.addr %s32, 128
          %s1356 = scalar_lea.hbm %s10, %s1355
          %s1358 = sshll.u32 %s1332, 4
          %s1359 = int_to_ptr.vmem [resolvable:$true] %s1358
          %1361 = dma.vmem_to_hbm [thread:$0]  %s1359, 128, %s1356, %s1329
        $region72: #{tpu_custom_call.1} parent=55 // pred_fallthru
          _
      $region56: #{tpu_custom_call.1} parent=5 // pred_fallthru
        _
      %p1362 = scmp.le.s32.totalorder 2, %s27
      // Predicated region
      $region73: #{tpu_custom_call.1} parent=5 // pred_check
        %p1363 = pneg %p1362
      $region74: #{tpu_custom_call.1} parent=5 // pred_check_branch
        %1365 = sbr.rel (%p1363) target = $region76
      $region75: #{tpu_custom_call.1} parent=5 // pred_region
        %s1366 = ssub.s32 %s27, 2
        // Predicated region
        $region77: #{tpu_custom_call.1} parent=75 // pred_check
          %p1367 = pneg %p250
        $region78: #{tpu_custom_call.1} parent=75 // pred_check_branch
          %1369 = sbr.rel (%p1367) target = $region80
        $region79: #{tpu_custom_call.1} parent=75 // pred_region
          %s1370 = sand.u32 %s235, 1
          %s1371 = scalar_lea.sflag [#allocation6], %s1370
          %s1372 = sand.u32 %s235, 1
          %s1373 = smul.addr %s1372, 16
          %s1374 = scalar_lea.vmem [#allocation9], %s1373
          %1375 = dma.done %s1371, 256
        $region80: #{tpu_custom_call.1} parent=75 // pred_fallthru
          _
        // Predicated region
        $region81: #{tpu_custom_call.1} parent=75 // pred_check
          %p1376 = pneg %p276
        $region82: #{tpu_custom_call.1} parent=75 // pred_check_branch
          %1378 = sbr.rel (%p1376) target = $region84
        $region83: #{tpu_custom_call.1} parent=75 // pred_region
          %s1379 = sand.u32 %s261, 1
          %s1380 = scalar_lea.sflag [#allocation11], %s1379
          %s1381 = sand.u32 %s261, 1
          %s1382 = smul.addr %s1381, 8
          %s1383 = scalar_lea.vmem [#allocation10], %s1382
          %1384 = dma.done %s1380, 128
        $region84: #{tpu_custom_call.1} parent=75 // pred_fallthru
          _
      $region76: #{tpu_custom_call.1} parent=5 // pred_fallthru
        _
    $region6: #{tpu_custom_call.1} parent=1 // loop_footer
      %s31 = sadd.s32 1, %s27
    $region7: #{tpu_custom_call.1} parent=1 // loop_footer_branch
      %26 = sbr.rel target = $region3
    $region8: #{tpu_custom_call.1} parent=1 // loop_exit
      _
    %1385 = vsyncpa [#allocation5], 1
    %s1386 = scalar_lea.sflag [#allocation5], 1
    %1387 = vsyncpa %s1386, 1
    %1388 = vsyncpa [#allocation8], 1
    %1389 = vsyncpa [#allocation6], 1
    %s1390 = scalar_lea.sflag [#allocation6], 1
    %1391 = vsyncpa %s1390, 1
    %1392 = vsyncpa [#allocation11], 1
    %s1393 = scalar_lea.sflag [#allocation11], 1
    %1394 = vsyncpa %s1393, 1

</llo_original>
